<compile_context>
chip_gen: v6e
topology: v6e:2x2x1
jax: 0.10.0
libtpu: 0.0.40
codegen_flags: <defaults>
</compile_context>

<pallas_src>
import functools
import math

import jax
import jax.numpy as jnp
from jax import lax
from jax.experimental import pallas as pl
from jax.experimental.pallas import tpu as pltpu

BN_EPS = 1e-3  # nn.BatchNorm2d(eps=0.001)


def _fused_kernel(*args, dilations, Wp, pad, inv_count):
    """Fused multi-grid block.

    args = [x_ref, valid_ref,
            (gamma, beta, w_taps, bias) * nblk,       # inputs
            o_ref,                                     # output
            ypad_ref]                                  # VMEM scratch
      x_ref     : (Cp, NP)            flattened padded activation (f32)
      valid_ref : (1, NP)             1.0 at interior pixels, 0.0 at halo
      gamma/beta/bias : (Cp, 1)
      w_taps    : (9, Cp, Cp)         w_taps[k, co, ci] for tap k = ky*3 + kx
      o_ref     : (Cp, NP)
      ypad_ref  : (Cp, NP + 2*pad)    flat-halo'd BN+ReLU result
    """
    nblk = len(dilations)
    x_ref, valid_ref = args[0], args[1]
    param_refs = args[2:2 + 4 * nblk]
    o_ref = args[2 + 4 * nblk]
    ypad_ref = args[3 + 4 * nblk]

    Cp, NP = x_ref.shape
    valid = valid_ref[...]                      # (1, NP) f32 {0,1}
    x = x_ref[...]                              # (Cp, NP) f32

    # Zero only the flat halos, once; the interior is overwritten every block.
    ypad_ref[:, :pad] = jnp.zeros((Cp, pad), jnp.float32)
    ypad_ref[:, pad + NP:pad + NP + pad] = jnp.zeros((Cp, pad), jnp.float32)

    # Block-0 BN stats: the input already has zero halos (jnp.pad), no mask.
    s1 = jnp.sum(x, axis=1, keepdims=True)                   # (Cp, 1)
    s2 = jnp.sum(x * x, axis=1, keepdims=True)               # (Cp, 1)

    for blk in range(nblk):
        g_ref, b_ref, w_ref, bias_ref = param_refs[4 * blk:4 * blk + 4]
        d = dilations[blk]

        # --- BatchNorm (train-mode batch stats over the N*H*W interior pixels)
        #     folded into one scale/shift FMA, then ReLU, then re-zero halo
        #     (the conv relies on halo pixels being exactly zero).
        # NOTE: one-pass E[x^2]-mean^2 variance; fine at these magnitudes.
        mean = s1 * inv_count
        var = jnp.maximum(s2 * inv_count - mean * mean, 0.0)
        scale = g_ref[...] * lax.rsqrt(var + BN_EPS)          # (Cp, 1)
        shift = b_ref[...] - mean * scale
        y = jnp.maximum(x * scale + shift, 0.0) * valid       # (Cp, NP)

        # --- Dilated 3x3 conv: 9 accumulating small matmuls, RHS read straight
        #     from the halo'd ref via static lane-slices (no im2col scratch,
        #     no whole-buffer value load).
        ypad_ref[:, pad:pad + NP] = y
        acc = None
        for ky in range(3):
            for kx in range(3):
                k = ky * 3 + kx
                s = ((ky - 1) * Wp + (kx - 1)) * d
                tap = ypad_ref[:, pad + s:pad + s + NP]       # (Cp, NP) from ref
                # TODO(synk): use precision=HIGHEST here if bit-parity with a
                # fp32 PyTorch conv is required (default truncates to bf16,
                # matching the XLA reference conv default).
                part = jnp.dot(w_ref[k], tap,
                               preferred_element_type=jnp.float32)
                acc = part if acc is None else acc + part
        x = acc + bias_ref[...]                               # bias along sublanes

        # Fuse the next block's BN stats into this block's epilogue (halo
        # positions of x hold conv garbage -> mask them out of the stats).
        if blk + 1 < nblk:
            xm = x * valid
            s1 = jnp.sum(xm, axis=1, keepdims=True)
            s2 = jnp.sum(xm * xm, axis=1, keepdims=True)

    o_ref[...] = x  # lane-dense store


def _pad_vec(v, cp):
    out = jnp.zeros((cp, 1), jnp.float32)
    return out.at[:v.shape[0], 0].set(v.astype(jnp.float32))


def _stack_weight(w_pt, cp):
    """(Cout, Cin, 3, 3) PyTorch layout -> (9, Cp, Cp), tap k = ky*3 + kx."""
    cout, cin = w_pt.shape[0], w_pt.shape[1]
    w = jnp.transpose(w_pt.astype(jnp.float32), (2, 3, 0, 1))   # (ky, kx, Cout, Cin)
    w = w.reshape(9, cout, cin)
    w_full = jnp.zeros((9, cp, cp), jnp.float32)
    return w_full.at[:, :cout, :cin].set(w)


def fused_mg_forward(x_nchw, blocks):
    """Run the (1 or 3) chained BnReluConv blocks as one fused Pallas kernel."""
    N, C, H, W = x_nchw.shape
    dilations = tuple(int(blk[4]) for blk in blocks)
    nblk = len(blocks)
    dmax = max(dilations)
    Hp, Wp = H + 2 * dmax, W + 2 * dmax
    NP = N * Hp * Wp
    Cp = ((C + 7) // 8) * 8                                   # sublane-pad channels
    pad = ((dmax * (Wp + 1) + 127) // 128) * 128              # flat halo, lane aligned

    # NCHW -> (Cp, N*Hp*Wp): channels on sublanes, flattened padded spatial on lanes.
    xc = jnp.transpose(x_nchw.astype(jnp.float32), (1, 0, 2, 3))      # (C, N, H, W)
    xc = jnp.pad(xc, ((0, Cp - C), (0, 0), (dmax, dmax), (dmax, dmax)))
    xflat = xc.reshape(Cp, NP)

    # Interior (non-halo) pixel mask, shared by all blocks (computed in XLA).
    hh = jnp.arange(Hp)
    ww = jnp.arange(Wp)
    v2 = ((hh[:, None] >= dmax) & (hh[:, None] < dmax + H)
          & (ww[None, :] >= dmax) & (ww[None, :] < dmax + W))
    validf = jnp.broadcast_to(v2[None], (N, Hp, Wp)).astype(jnp.float32).reshape(1, NP)

    inputs = [xflat, validf]
    for gamma, beta, w_pt, bias, _d in blocks:
        inputs += [_pad_vec(gamma, Cp), _pad_vec(beta, Cp),
                   _stack_weight(w_pt, Cp), _pad_vec(bias, Cp)]

    kern = functools.partial(_fused_kernel, dilations=dilations, Wp=Wp,
                             pad=pad, inv_count=1.0 / float(N * H * W))

    # VMEM budget derived from the actual footprint (x + out + valid + ypad
    # scratch + params), with headroom; clamped to stay within v7x's 64 MiB
    # physical VMEM for small shapes and to allow large activations on v5e/v6e.
    buf_bytes = 4 * (2 * Cp * NP + NP + Cp * (NP + 2 * pad)
                     + nblk * (9 * Cp * Cp + 3 * Cp))
    vmem_limit = int(min(96 * 1024 * 1024, max(32 * 1024 * 1024, 3 * buf_bytes)))

    flops = nblk * (2 * Cp * Cp * 9 * NP + 12 * Cp * NP)
    bytes_accessed = 4 * (2 * Cp * NP + NP + nblk * (9 * Cp * Cp + 3 * Cp))

    out_flat = pl.pallas_call(
        kern,
        out_shape=jax.ShapeDtypeStruct((Cp, NP), jnp.float32),
        in_specs=[pl.BlockSpec(memory_space=pltpu.MemorySpace.VMEM)] * len(inputs),
        out_specs=pl.BlockSpec(memory_space=pltpu.MemorySpace.VMEM),
        scratch_shapes=[pltpu.VMEM((Cp, NP + 2 * pad), jnp.float32)],   # ypad only
        compiler_params=pltpu.CompilerParams(vmem_limit_bytes=vmem_limit),
        cost_estimate=pl.CostEstimate(flops=int(flops),
                                      transcendentals=int(nblk * Cp),
                                      bytes_accessed=int(bytes_accessed)),
    )(*inputs)

    out = out_flat[:C].reshape(C, N, Hp, Wp)[:, :, dmax:dmax + H, dmax:dmax + W]
    return jnp.transpose(out, (1, 0, 2, 3))                   # back to NCHW


def _init_conv_weight(key, nb_filter, ini):
    """Deterministic init matching the module, in PyTorch (Cout, Cin, kh, kw)."""
    if ini == 'identity':
        w_pt = jnp.zeros((nb_filter, nb_filter, 3, 3), jnp.float32)
        idx = jnp.arange(nb_filter)
        w_pt = w_pt.at[idx, idx, 1, 1].set(1.0)               # dirac init
    else:
        fan_in = nb_filter * 3 * 3
        gain = math.sqrt(2.0)                                 # calculate_gain('relu', 0)
        bound = math.sqrt(3.0) * gain / math.sqrt(fan_in)
        w_pt = jax.random.uniform(key, (nb_filter, nb_filter, 3, 3),
                                  jnp.float32, -bound, bound)
    return w_pt


class PreprocessBlockBottleMg:
    """JAX/Pallas re-implementation of the PyTorch module's forward pass."""

    def __init__(self, nb_filter, dropout=0.0, dilation=1, bias=True,
                 bn_momentum=0.1, mg=(1, 2, 1), ini='random',
                 key=jax.random.PRNGKey(42)):
        del dropout, bias, bn_momentum   # dropout=0 path; conv bias kept (zero init)
        self.dil_factor = int(dilation)
        if self.dil_factor == 1:
            dils = [1]
        else:
            dils = [mg[0] * self.dil_factor, mg[1] * self.dil_factor,
                    mg[2] * self.dil_factor]
        self.blocks = []
        for d in dils:
            key, wk = jax.random.split(key)
            # PyTorch: the dilation==1 branch always uses kaiming_uniform (ini ignored).
            w_pt = _init_conv_weight(
                wk, nb_filter, ini if self.dil_factor != 1 else 'random')
            b = jnp.zeros((nb_filter,), jnp.float32)
            gamma = jnp.ones((nb_filter,), jnp.float32)       # BN weight = 1
            beta = jnp.zeros((nb_filter,), jnp.float32)       # BN bias = 0
            self.blocks.append((gamma, beta, w_pt, b, int(d)))

    def __call__(self, x_nchw):
        return fused_mg_forward(x_nchw, self.blocks)


# ---------------- pure-JAX reference (for correctness check) ----------------
def _ref_bn_relu_conv(x_nhwc, gamma, beta, w_pt, b, d):
    mean = jnp.mean(x_nhwc, axis=(0, 1, 2), keepdims=True)
    var = jnp.mean((x_nhwc - mean) ** 2, axis=(0, 1, 2), keepdims=True)
    y = jnp.maximum((x_nhwc - mean) * lax.rsqrt(var + BN_EPS)
                    * gamma.reshape(1, 1, 1, -1) + beta.reshape(1, 1, 1, -1), 0.0)
    w_hwio = jnp.transpose(w_pt, (2, 3, 1, 0))
    out = lax.conv_general_dilated(
        y, w_hwio, window_strides=(1, 1), padding=[(d, d), (d, d)],
        rhs_dilation=(d, d), dimension_numbers=('NHWC', 'HWIO', 'NHWC'))
    return out + b.reshape(1, 1, 1, -1)


def _ref_forward(module, x_nchw):
    x = jnp.transpose(x_nchw, (0, 2, 3, 1))
    for gamma, beta, w_pt, b, d in module.blocks:
        x = _ref_bn_relu_conv(x, gamma, beta, w_pt, b, d)
    return jnp.transpose(x, (0, 3, 1, 2))


if __name__ == "__main__":
    key = jax.random.PRNGKey(0)
    B, C, Hs, Ws = 2, 4, 16, 16
    x = jax.random.normal(key, (B, C, Hs, Ws), jnp.float32)   # NCHW like PyTorch

    # Case 1: dil_factor == 1 -> single BnReluConv block.
    mod1 = PreprocessBlockBottleMg(nb_filter=C, dilation=1,
                                   key=jax.random.PRNGKey(1))
    out1 = jax.block_until_ready(mod1(x))
    ref1 = _ref_forward(mod1, x)

    # Case 2: dil_factor == 2, mg=[1,2,1] -> three fused dilated blocks (d = 2, 4, 2).
    mod2 = PreprocessBlockBottleMg(nb_filter=C, dilation=2, mg=(1, 2, 1),
                                   key=jax.random.PRNGKey(2))
    out2 = jax.block_until_ready(mod2(x))
    ref2 = _ref_forward(mod2, x)

    assert out1.shape == (B, C, Hs, Ws) and out2.shape == (B, C, Hs, Ws)
    assert jnp.allclose(out1, ref1, atol=1e-4, rtol=1e-4)
    assert jnp.allclose(out2, ref2, atol=1e-4, rtol=1e-4)
    print("KERNEL_OK")
</pallas_src>

<mosaic_0001>
module attributes {stable_mosaic.version = 11 : i64} {
  func.func @_fused_kernel(%arg0: memref<8x648xf32, #tpu.memory_space<vmem>>, %arg1: memref<1x648xf32, #tpu.memory_space<vmem>>, %arg2: memref<8x1xf32, #tpu.memory_space<vmem>>, %arg3: memref<8x1xf32, #tpu.memory_space<vmem>>, %arg4: memref<9x8x8xf32, #tpu.memory_space<vmem>>, %arg5: memref<8x1xf32, #tpu.memory_space<vmem>>, %arg6: memref<8x648xf32, #tpu.memory_space<vmem>>, %arg7: memref<8x904xf32, #tpu.memory_space<vmem>>) attributes {dimension_semantics = [], scalar_prefetch = 0 : i64, scratch_operands = 1 : i64, tpu.core_type = #tpu.core_type<tc>} {
    %c0 = arith.constant 0 : index
    %c0_0 = arith.constant 0 : index
    %0 = vector.load %arg1[%c0, %c0_0] : memref<1x648xf32, #tpu.memory_space<vmem>>, vector<1x648xf32>
    %c0_1 = arith.constant 0 : index
    %c0_2 = arith.constant 0 : index
    %1 = vector.load %arg0[%c0_1, %c0_2] : memref<8x648xf32, #tpu.memory_space<vmem>>, vector<8x648xf32>
    %cst = arith.constant 0.000000e+00 : f32
    %2 = vector.broadcast %cst : f32 to vector<8x128xf32>
    %c0_3 = arith.constant 0 : index
    %c0_4 = arith.constant 0 : index
    %3 = vector.load %arg7[%c0_3, %c0_4] : memref<8x904xf32, #tpu.memory_space<vmem>>, vector<8x128xf32>
    tpu.vector_store %arg7[%c0_3, %c0_4], %2 {strides = array<i32>} : memref<8x904xf32, #tpu.memory_space<vmem>>, vector<8x128xf32>,
    %cst_5 = arith.constant 0.000000e+00 : f32
    %4 = vector.broadcast %cst_5 : f32 to vector<8x128xf32>
    %c0_6 = arith.constant 0 : index
    %c776 = arith.constant 776 : index
    %5 = vector.load %arg7[%c0_6, %c776] : memref<8x904xf32, #tpu.memory_space<vmem>>, vector<8x128xf32>
    tpu.vector_store %arg7[%c0_6, %c776], %4 {strides = array<i32>} : memref<8x904xf32, #tpu.memory_space<vmem>>, vector<8x128xf32>,
    %cst_7 = arith.constant dense<0.000000e+00> : vector<8xf32>
    %6 = vector.multi_reduction <add>, %1, %cst_7 [1] : vector<8x648xf32> to vector<8xf32>
    %7 = vector.shape_cast %6 : vector<8xf32> to vector<8x1xf32>
    %8 = arith.mulf %1, %1 : vector<8x648xf32>
    %cst_8 = arith.constant dense<0.000000e+00> : vector<8xf32>
    %9 = vector.multi_reduction <add>, %8, %cst_8 [1] : vector<8x648xf32> to vector<8xf32>
    %10 = vector.shape_cast %9 : vector<8xf32> to vector<8x1xf32>
    %cst_9 = arith.constant 0.001953125 : f32
    %11 = vector.broadcast %cst_9 : f32 to vector<8x1xf32>
    %12 = arith.mulf %7, %11 : vector<8x1xf32>
    %cst_10 = arith.constant 0.001953125 : f32
    %13 = vector.broadcast %cst_10 : f32 to vector<8x1xf32>
    %14 = arith.mulf %10, %13 : vector<8x1xf32>
    %15 = arith.mulf %12, %12 : vector<8x1xf32>
    %16 = arith.subf %14, %15 : vector<8x1xf32>
    %cst_11 = arith.constant 0.000000e+00 : f32
    %17 = vector.broadcast %cst_11 : f32 to vector<8x1xf32>
    %18 = arith.maximumf %16, %17 : vector<8x1xf32>
    %c0_12 = arith.constant 0 : index
    %c0_13 = arith.constant 0 : index
    %19 = vector.load %arg2[%c0_12, %c0_13] : memref<8x1xf32, #tpu.memory_space<vmem>>, vector<8x1xf32>
    %cst_14 = arith.constant 1.000000e-03 : f32
    %20 = vector.broadcast %cst_14 : f32 to vector<8x1xf32>
    %21 = arith.addf %18, %20 : vector<8x1xf32>
    %22 = math.rsqrt %21 : vector<8x1xf32>
    %23 = arith.mulf %19, %22 : vector<8x1xf32>
    %c0_15 = arith.constant 0 : index
    %c0_16 = arith.constant 0 : index
    %24 = vector.load %arg3[%c0_15, %c0_16] : memref<8x1xf32, #tpu.memory_space<vmem>>, vector<8x1xf32>
    %25 = arith.mulf %12, %23 : vector<8x1xf32>
    %26 = arith.subf %24, %25 : vector<8x1xf32>
    %27 = vector.broadcast %23 : vector<8x1xf32> to vector<8x648xf32>
    %28 = arith.mulf %1, %27 : vector<8x648xf32>
    %29 = vector.broadcast %26 : vector<8x1xf32> to vector<8x648xf32>
    %30 = arith.addf %28, %29 : vector<8x648xf32>
    %cst_17 = arith.constant 0.000000e+00 : f32
    %31 = vector.broadcast %cst_17 : f32 to vector<8x648xf32>
    %32 = arith.maximumf %30, %31 : vector<8x648xf32>
    %33 = vector.broadcast %0 : vector<1x648xf32> to vector<8x648xf32>
    %34 = arith.mulf %32, %33 : vector<8x648xf32>
    %c0_18 = arith.constant 0 : index
    %c128 = arith.constant 128 : index
    %35 = vector.load %arg7[%c0_18, %c128] : memref<8x904xf32, #tpu.memory_space<vmem>>, vector<8x648xf32>
    tpu.vector_store %arg7[%c0_18, %c128], %34 {strides = array<i32>} : memref<8x904xf32, #tpu.memory_space<vmem>>, vector<8x648xf32>,
    %c0_19 = arith.constant 0 : index
    %c109 = arith.constant 109 : index
    %36 = vector.load %arg7[%c0_19, %c109] : memref<8x904xf32, #tpu.memory_space<vmem>>, vector<8x648xf32>
    %c0_20 = arith.constant 0 : index
    %c0_21 = arith.constant 0 : index
    %c0_22 = arith.constant 0 : index
    %37 = vector.load %arg4[%c0_20, %c0_21, %c0_22] : memref<9x8x8xf32, #tpu.memory_space<vmem>>, vector<1x8x8xf32>
    %38 = vector.shape_cast %37 : vector<1x8x8xf32> to vector<8x8xf32>
    %cst_23 = arith.constant dense<0.000000e+00> : vector<8x648xf32>
    %39 = tpu.matmul %38, %36, %cst_23 {dimension_numbers = #tpu.dot_dimension_numbers<[1], [0], [0], [1], [0, 0, 1, 1], [], []>} : vector<8x8xf32>, vector<8x648xf32>, vector<8x648xf32> -> vector<8x648xf32>
    %c0_24 = arith.constant 0 : index
    %c110 = arith.constant 110 : index
    %40 = vector.load %arg7[%c0_24, %c110] : memref<8x904xf32, #tpu.memory_space<vmem>>, vector<8x648xf32>
    %c1 = arith.constant 1 : index
    %c0_25 = arith.constant 0 : index
    %c0_26 = arith.constant 0 : index
    %41 = vector.load %arg4[%c1, %c0_25, %c0_26] : memref<9x8x8xf32, #tpu.memory_space<vmem>>, vector<1x8x8xf32>
    %42 = vector.shape_cast %41 : vector<1x8x8xf32> to vector<8x8xf32>
    %cst_27 = arith.constant dense<0.000000e+00> : vector<8x648xf32>
    %43 = tpu.matmul %42, %40, %cst_27 {dimension_numbers = #tpu.dot_dimension_numbers<[1], [0], [0], [1], [0, 0, 1, 1], [], []>} : vector<8x8xf32>, vector<8x648xf32>, vector<8x648xf32> -> vector<8x648xf32>
    %44 = arith.addf %39, %43 : vector<8x648xf32>
    %c0_28 = arith.constant 0 : index
    %c111 = arith.constant 111 : index
    %45 = vector.load %arg7[%c0_28, %c111] : memref<8x904xf32, #tpu.memory_space<vmem>>, vector<8x648xf32>
    %c2 = arith.constant 2 : index
    %c0_29 = arith.constant 0 : index
    %c0_30 = arith.constant 0 : index
    %46 = vector.load %arg4[%c2, %c0_29, %c0_30] : memref<9x8x8xf32, #tpu.memory_space<vmem>>, vector<1x8x8xf32>
    %47 = vector.shape_cast %46 : vector<1x8x8xf32> to vector<8x8xf32>
    %cst_31 = arith.constant dense<0.000000e+00> : vector<8x648xf32>
    %48 = tpu.matmul %47, %45, %cst_31 {dimension_numbers = #tpu.dot_dimension_numbers<[1], [0], [0], [1], [0, 0, 1, 1], [], []>} : vector<8x8xf32>, vector<8x648xf32>, vector<8x648xf32> -> vector<8x648xf32>
    %49 = arith.addf %44, %48 : vector<8x648xf32>
    %c0_32 = arith.constant 0 : index
    %c127 = arith.constant 127 : index
    %50 = vector.load %arg7[%c0_32, %c127] : memref<8x904xf32, #tpu.memory_space<vmem>>, vector<8x648xf32>
    %c3 = arith.constant 3 : index
    %c0_33 = arith.constant 0 : index
    %c0_34 = arith.constant 0 : index
    %51 = vector.load %arg4[%c3, %c0_33, %c0_34] : memref<9x8x8xf32, #tpu.memory_space<vmem>>, vector<1x8x8xf32>
    %52 = vector.shape_cast %51 : vector<1x8x8xf32> to vector<8x8xf32>
    %cst_35 = arith.constant dense<0.000000e+00> : vector<8x648xf32>
    %53 = tpu.matmul %52, %50, %cst_35 {dimension_numbers = #tpu.dot_dimension_numbers<[1], [0], [0], [1], [0, 0, 1, 1], [], []>} : vector<8x8xf32>, vector<8x648xf32>, vector<8x648xf32> -> vector<8x648xf32>
    %54 = arith.addf %49, %53 : vector<8x648xf32>
    %c0_36 = arith.constant 0 : index
    %c128_37 = arith.constant 128 : index
    %55 = vector.load %arg7[%c0_36, %c128_37] : memref<8x904xf32, #tpu.memory_space<vmem>>, vector<8x648xf32>
    %c4 = arith.constant 4 : index
    %c0_38 = arith.constant 0 : index
    %c0_39 = arith.constant 0 : index
    %56 = vector.load %arg4[%c4, %c0_38, %c0_39] : memref<9x8x8xf32, #tpu.memory_space<vmem>>, vector<1x8x8xf32>
    %57 = vector.shape_cast %56 : vector<1x8x8xf32> to vector<8x8xf32>
    %cst_40 = arith.constant dense<0.000000e+00> : vector<8x648xf32>
    %58 = tpu.matmul %57, %55, %cst_40 {dimension_numbers = #tpu.dot_dimension_numbers<[1], [0], [0], [1], [0, 0, 1, 1], [], []>} : vector<8x8xf32>, vector<8x648xf32>, vector<8x648xf32> -> vector<8x648xf32>
    %59 = arith.addf %54, %58 : vector<8x648xf32>
    %c0_41 = arith.constant 0 : index
    %c129 = arith.constant 129 : index
    %60 = vector.load %arg7[%c0_41, %c129] : memref<8x904xf32, #tpu.memory_space<vmem>>, vector<8x648xf32>
    %c5 = arith.constant 5 : index
    %c0_42 = arith.constant 0 : index
    %c0_43 = arith.constant 0 : index
    %61 = vector.load %arg4[%c5, %c0_42, %c0_43] : memref<9x8x8xf32, #tpu.memory_space<vmem>>, vector<1x8x8xf32>
    %62 = vector.shape_cast %61 : vector<1x8x8xf32> to vector<8x8xf32>
    %cst_44 = arith.constant dense<0.000000e+00> : vector<8x648xf32>
    %63 = tpu.matmul %62, %60, %cst_44 {dimension_numbers = #tpu.dot_dimension_numbers<[1], [0], [0], [1], [0, 0, 1, 1], [], []>} : vector<8x8xf32>, vector<8x648xf32>, vector<8x648xf32> -> vector<8x648xf32>
    %64 = arith.addf %59, %63 : vector<8x648xf32>
    %c0_45 = arith.constant 0 : index
    %c145 = arith.constant 145 : index
    %65 = vector.load %arg7[%c0_45, %c145] : memref<8x904xf32, #tpu.memory_space<vmem>>, vector<8x648xf32>
    %c6 = arith.constant 6 : index
    %c0_46 = arith.constant 0 : index
    %c0_47 = arith.constant 0 : index
    %66 = vector.load %arg4[%c6, %c0_46, %c0_47] : memref<9x8x8xf32, #tpu.memory_space<vmem>>, vector<1x8x8xf32>
    %67 = vector.shape_cast %66 : vector<1x8x8xf32> to vector<8x8xf32>
    %cst_48 = arith.constant dense<0.000000e+00> : vector<8x648xf32>
    %68 = tpu.matmul %67, %65, %cst_48 {dimension_numbers = #tpu.dot_dimension_numbers<[1], [0], [0], [1], [0, 0, 1, 1], [], []>} : vector<8x8xf32>, vector<8x648xf32>, vector<8x648xf32> -> vector<8x648xf32>
    %69 = arith.addf %64, %68 : vector<8x648xf32>
    %c0_49 = arith.constant 0 : index
    %c146 = arith.constant 146 : index
    %70 = vector.load %arg7[%c0_49, %c146] : memref<8x904xf32, #tpu.memory_space<vmem>>, vector<8x648xf32>
    %c7 = arith.constant 7 : index
    %c0_50 = arith.constant 0 : index
    %c0_51 = arith.constant 0 : index
    %71 = vector.load %arg4[%c7, %c0_50, %c0_51] : memref<9x8x8xf32, #tpu.memory_space<vmem>>, vector<1x8x8xf32>
    %72 = vector.shape_cast %71 : vector<1x8x8xf32> to vector<8x8xf32>
    %cst_52 = arith.constant dense<0.000000e+00> : vector<8x648xf32>
    %73 = tpu.matmul %72, %70, %cst_52 {dimension_numbers = #tpu.dot_dimension_numbers<[1], [0], [0], [1], [0, 0, 1, 1], [], []>} : vector<8x8xf32>, vector<8x648xf32>, vector<8x648xf32> -> vector<8x648xf32>
    %74 = arith.addf %69, %73 : vector<8x648xf32>
    %c0_53 = arith.constant 0 : index
    %c147 = arith.constant 147 : index
    %75 = vector.load %arg7[%c0_53, %c147] : memref<8x904xf32, #tpu.memory_space<vmem>>, vector<8x648xf32>
    %c8 = arith.constant 8 : index
    %c0_54 = arith.constant 0 : index
    %c0_55 = arith.constant 0 : index
    %76 = vector.load %arg4[%c8, %c0_54, %c0_55] : memref<9x8x8xf32, #tpu.memory_space<vmem>>, vector<1x8x8xf32>
    %77 = vector.shape_cast %76 : vector<1x8x8xf32> to vector<8x8xf32>
    %cst_56 = arith.constant dense<0.000000e+00> : vector<8x648xf32>
    %78 = tpu.matmul %77, %75, %cst_56 {dimension_numbers = #tpu.dot_dimension_numbers<[1], [0], [0], [1], [0, 0, 1, 1], [], []>} : vector<8x8xf32>, vector<8x648xf32>, vector<8x648xf32> -> vector<8x648xf32>
    %79 = arith.addf %74, %78 : vector<8x648xf32>
    %c0_57 = arith.constant 0 : index
    %c0_58 = arith.constant 0 : index
    %80 = vector.load %arg5[%c0_57, %c0_58] : memref<8x1xf32, #tpu.memory_space<vmem>>, vector<8x1xf32>
    %81 = vector.broadcast %80 : vector<8x1xf32> to vector<8x648xf32>
    %82 = arith.addf %79, %81 : vector<8x648xf32>
    %c0_59 = arith.constant 0 : index
    %c0_60 = arith.constant 0 : index
    %83 = vector.load %arg6[%c0_59, %c0_60] : memref<8x648xf32, #tpu.memory_space<vmem>>, vector<8x648xf32>
    tpu.vector_store %arg6[%c0_59, %c0_60], %82 {strides = array<i32>} : memref<8x648xf32, #tpu.memory_space<vmem>>, vector<8x648xf32>,
    return
  }
}

</mosaic_0001>

<llo_original>
// kernel: tpu_custom_call.1
$region0: #{tpu_custom_call.1}
  #allocation0 [shape = 'u32[]', space=smem, size = 0x4, offset = 0x4, fixed_abs, tag = 'smem constant byte address 0x4 - core index']
  #allocation1 [shape = 'u32[144,128]{1,0:T(1,128)}', space=vmem, size = 0x12000, scoped, tag = 'internal scratch']
  #allocation2 [shape = 'f32[8,904]{1,0:T(8,128)}', space=vmem, size = 0x8000, scoped, tag = 'scratch operand']
  %s0 = inlined_call_operand.vmem [shape: f32[8,648], index: 0, kind: input, shape index: {}]
  %s1 = inlined_call_operand.vmem [shape: f32[1,648], index: 1, kind: input, shape index: {}]
  %s2 = inlined_call_operand.vmem [shape: f32[8,1], index: 2, kind: input, shape index: {}]
  %s3 = inlined_call_operand.vmem [shape: f32[8,1], index: 3, kind: input, shape index: {}]
  %s4 = inlined_call_operand.vmem [shape: f32[9,8,8], index: 4, kind: input, shape index: {}]
  %s5 = inlined_call_operand.vmem [shape: f32[8,1], index: 5, kind: input, shape index: {}]
  %s6 = inlined_call_operand.hbm [shape: f32[8,648], index: 6, kind: output, shape index: {}]
  %s7 = sld [smem:[#allocation0]]
  $region34: #{tpu_custom_call.1} parent=0
    _
  %s9 = ssub.s32 1, %s7
  %s10 = scalar_select 0, %s9, %s7
  $region1: #{tpu_custom_call.1} parent=0
    #allocation3 [shape = 'u8[24576]{0}', space=vmem, size = 0x6000, scoped, tag = 'output window, operand 0, single buffered']
    #allocation4 [shape = 's32[1]{0}', space=sflag, size = 0x4, scoped, tag = 'scoped memory for tpu_custom_call.1']
    %11 = vsyncpa [#allocation4], 0
    // Predicated region
    $region2: #{tpu_custom_call.1} parent=1 // pred_check
      _
    $region3: #{tpu_custom_call.1} parent=1 // pred_check_branch
      %13 = sbr.rel (0) target = $region5
    $region4: #{tpu_custom_call.1} parent=1 // pred_region
      _
    $region5: #{tpu_custom_call.1} parent=1 // pred_fallthru
      _
    // Predicated region
    $region6: #{tpu_custom_call.1} parent=1 // pred_check
      _
    $region7: #{tpu_custom_call.1} parent=1 // pred_check_branch
      %15 = sbr.rel (0) target = $region9
    $region8: #{tpu_custom_call.1} parent=1 // pred_region
      _
    $region9: #{tpu_custom_call.1} parent=1 // pred_fallthru
      _
    // Predicated region
    $region10: #{tpu_custom_call.1} parent=1 // pred_check
      _
    $region11: #{tpu_custom_call.1} parent=1 // pred_check_branch
      %17 = sbr.rel (0) target = $region13
    $region12: #{tpu_custom_call.1} parent=1 // pred_region
      _
    $region13: #{tpu_custom_call.1} parent=1 // pred_fallthru
      _
    // Predicated region
    $region14: #{tpu_custom_call.1} parent=1 // pred_check
      _
    $region15: #{tpu_custom_call.1} parent=1 // pred_check_branch
      %19 = sbr.rel (0) target = $region17
    $region16: #{tpu_custom_call.1} parent=1 // pred_region
      _
    $region17: #{tpu_custom_call.1} parent=1 // pred_fallthru
      _
    // Predicated region
    $region18: #{tpu_custom_call.1} parent=1 // pred_check
      _
    $region19: #{tpu_custom_call.1} parent=1 // pred_check_branch
      %21 = sbr.rel (0) target = $region21
    $region20: #{tpu_custom_call.1} parent=1 // pred_region
      _
    $region21: #{tpu_custom_call.1} parent=1 // pred_fallthru
      _
    // Predicated region
    $region22: #{tpu_custom_call.1} parent=1 // pred_check
      _
    $region23: #{tpu_custom_call.1} parent=1 // pred_check_branch
      %23 = sbr.rel (0) target = $region25
    $region24: #{tpu_custom_call.1} parent=1 // pred_region
      _
    $region25: #{tpu_custom_call.1} parent=1 // pred_fallthru
      _
    %v24 = vld [vmem:[%s1] sm:$0x3f]
    %v25 = vld [vmem:[%s0] sm:$0xff]
    %v26 = vld [vmem:[%s0 + $0x8] sm:$0xff]
    %v27 = vld [vmem:[%s0 + $0x10] sm:$0xff]
    %v28 = vld [vmem:[%s0 + $0x18] sm:$0xff]
    %v29 = vld [vmem:[%s0 + $0x20] sm:$0xff]
    %v30 = vld [vmem:[%s0 + $0x28] sm:$0xff]
    %31 = vst [vmem:[#allocation2] sm:$0xff] 0.0
    %vm32 = vcmask 1047616
    %33 = vst.msk [vmem:[#allocation2 + $0x30] sm:$0xff] %vm32, 0.0
    %vm34 = vcmask 64512
    %35 = vst.msk [vmem:[#allocation2 + $0x38] sm:$0xff] %vm34, 0.0
    %v36 = vadd.f32 %v25, %v26
    %v37 = vadd.f32 %v36, %v27
    %v38 = vadd.f32 %v37, %v28
    %v39 = vadd.f32 %v38, %v29
    %v40 = vsel %vm34, %v30, 0.0
    %v41 = vadd.f32 %v39, %v40
    %42 = vadd.xlane.f32.xlu0 %v41
    %v43 = vpop.xlane.xlu0 %42
    %v44 = vmul.f32 %v25, %v25
    %v45 = vmul.f32 %v26, %v26
    %v46 = vmul.f32 %v27, %v27
    %v47 = vmul.f32 %v28, %v28
    %v48 = vmul.f32 %v29, %v29
    %v49 = vmul.f32 %v30, %v30
    %v50 = vadd.f32 %v44, %v45
    %v51 = vadd.f32 %v50, %v46
    %v52 = vadd.f32 %v51, %v47
    %v53 = vadd.f32 %v52, %v48
    %v54 = vsel %vm34, %v49, 0.0
    %v55 = vadd.f32 %v53, %v54
    %56 = vadd.xlane.f32.xlu0 %v55
    %v57 = vpop.xlane.xlu0 %56
    %v58 = vmul.f32 %v43, 0.001953125
    %v59 = vmul.f32 %v57, 0.001953125
    %v60 = vmul.f32 %v58, %v58
    %v61 = vsub.f32 %v59, %v60
    %v62 = vmax.f32 %v61, 0.0
    %v63 = vld [vmem:[%s2] sm:$0xff]
    %v64 = vadd.f32 %v62, 0.001
    %v65 = vrsqrt.pop %v64
    %v66 = vmul.f32 %v63, %v65
    %v67 = vld [vmem:[%s3] sm:$0xff]
    %v68 = vmul.f32 %v58, %v66
    %v69 = vsub.f32 %v67, %v68
    %71 = vset.pattern.permute.xlu0 0
    %72 = vperm.xlu0 %71, %v66
    %v73 = vpop.permute.xlu0 %72
    %v75 = vmul.f32 %v25, %v73
    %v76 = vmul.f32 %v26, %v73
    %v77 = vmul.f32 %v27, %v73
    %v78 = vmul.f32 %v28, %v73
    %v79 = vmul.f32 %v29, %v73
    %v80 = vmul.f32 %v30, %v73
    %82 = vset.pattern.permute.xlu0 0
    %83 = vperm.xlu0 %82, %v69
    %v84 = vpop.permute.xlu0 %83
    %v86 = vadd.f32 %v75, %v84
    %v87 = vadd.f32 %v76, %v84
    %v88 = vadd.f32 %v77, %v84
    %v89 = vadd.f32 %v78, %v84
    %v90 = vadd.f32 %v79, %v84
    %v91 = vadd.f32 %v80, %v84
    %v92 = vmax.f32 %v86, 0.0
    %v93 = vmax.f32 %v87, 0.0
    %v94 = vmax.f32 %v88, 0.0
    %v95 = vmax.f32 %v89, 0.0
    %v96 = vmax.f32 %v90, 0.0
    %v97 = vmax.f32 %v91, 0.0
    %v99 = vlaneseq
    %v100 = vshrl.u32 %v99, 7
    %v101 = vsub.s32 0, %v100
    %v102 = vrot.slane %v24, %v101
    %v103 = vlaneseq
    %v104 = vshrl.u32 %v103, 7
    %v105 = vsub.s32 1, %v104
    %v106 = vrot.slane %v24, %v105
    %v107 = vlaneseq
    %v108 = vshrl.u32 %v107, 7
    %v109 = vsub.s32 2, %v108
    %v110 = vrot.slane %v24, %v109
    %v111 = vlaneseq
    %v112 = vshrl.u32 %v111, 7
    %v113 = vsub.s32 3, %v112
    %v114 = vrot.slane %v24, %v113
    %v115 = vlaneseq
    %v116 = vshrl.u32 %v115, 7
    %v117 = vsub.s32 4, %v116
    %v118 = vrot.slane %v24, %v117
    %v119 = vlaneseq
    %v120 = vshrl.u32 %v119, 7
    %v121 = vsub.s32 5, %v120
    %v122 = vrot.slane %v24, %v121
    %v129 = vmul.f32 %v92, %v102
    %v130 = vmul.f32 %v93, %v106
    %v131 = vmul.f32 %v94, %v110
    %v132 = vmul.f32 %v95, %v114
    %v133 = vmul.f32 %v96, %v118
    %v134 = vmul.f32 %v97, %v122
    %135 = vst [vmem:[#allocation2 + $0x8] sm:$0xff] %v129
    %136 = vst [vmem:[#allocation2 + $0x10] sm:$0xff] %v130
    %137 = vst [vmem:[#allocation2 + $0x18] sm:$0xff] %v131
    %138 = vst [vmem:[#allocation2 + $0x20] sm:$0xff] %v132
    %139 = vst [vmem:[#allocation2 + $0x28] sm:$0xff] %v133
    %140 = vst.msk [vmem:[#allocation2 + $0x30] sm:$0xff] %vm34, %v134
    %v141 = vld [vmem:[#allocation2] sm:$0xff]
    %v142 = vld [vmem:[#allocation2 + $0x8] sm:$0xff]
    %v143 = vld [vmem:[#allocation2 + $0x10] sm:$0xff]
    %v144 = vld [vmem:[#allocation2 + $0x18] sm:$0xff]
    %v145 = vld [vmem:[#allocation2 + $0x20] sm:$0xff]
    %v146 = vld [vmem:[#allocation2 + $0x28] sm:$0xff]
    %v147 = vld [vmem:[%s4] sm:$0xff]
    %s148 = scalar_lea.vmem %s4, 8
    %v149 = vld [vmem:[%s148] sm:$0xff]
    %156 = vrot.lane.b32.xlu0 %v141, 18
    %v157 = vpop.permute.xlu0 %156
    %158 = vrot.lane.b32.xlu0 %v142, 18
    %v159 = vpop.permute.xlu0 %158
    %160 = vrot.lane.b32.xlu0 %v143, 18
    %v161 = vpop.permute.xlu0 %160
    %162 = vrot.lane.b32.xlu0 %v144, 18
    %v163 = vpop.permute.xlu0 %162
    %164 = vrot.lane.b32.xlu0 %v145, 18
    %v165 = vpop.permute.xlu0 %164
    %166 = vrot.lane.b32.xlu0 %v146, 18
    %v167 = vpop.permute.xlu0 %166
    %vm168 = vcmask 146432
    %v169 = vsel %vm168, %v157, %v159
    %v170 = vsel %vm168, %v159, %v161
    %v171 = vsel %vm168, %v161, %v163
    %v172 = vsel %vm168, %v163, %v165
    %v173 = vsel %vm168, %v165, %v167
    %v181 = vsel %vm34, %v149, 0
    %183 = vmatprep.subr.mxu0 0.0
    %184 = vmatpush1.msra.mxu0 0.0
    %185 = vmatprep.subr.mxu0 0.0
    %186 = vmatpush1.msra.mxu0 0.0
    %187 = vmatprep.subr.mxu0 0.0
    %188 = vmatpush1.msra.mxu0 0.0
    %189 = vmatprep.subr.mxu0 0.0
    %190 = vmatpush1.msra.mxu0 0.0
    %191 = vmatprep.subr.mxu0 0.0
    %192 = vmatpush1.msra.mxu0 0.0
    %193 = vmatprep.subr.mxu0 0.0
    %194 = vmatpush1.msra.mxu0 0.0
    %195 = vmatprep.subr.mxu0 0.0
    %196 = vmatpush1.msra.mxu0 0.0
    %197 = vmatprep.subr.mxu0 0.0
    %198 = vmatpush1.msra.mxu0 0.0
    %199 = vmatprep.subr.mxu0 0.0
    %200 = vmatpush1.msra.mxu0 0.0
    %201 = vmatprep.subr.mxu0 0.0
    %202 = vmatpush1.msra.mxu0 0.0
    %203 = vmatprep.subr.mxu0 0.0
    %204 = vmatpush1.msra.mxu0 0.0
    %205 = vmatprep.subr.mxu0 0.0
    %206 = vmatpush1.msra.mxu0 0.0
    %207 = vmatprep.subr.mxu0 0.0
    %208 = vmatpush1.msra.mxu0 0.0
    %209 = vmatprep.subr.mxu0 0.0
    %210 = vmatpush1.msra.mxu0 0.0
    %211 = vmatprep.subr.mxu0 0.0
    %212 = vmatpush1.msra.mxu0 0.0
    %213 = vmatprep.subr.mxu0 %v170
    %214 = vmatpush1.msra.mxu0 %v169
    %215 = vmatprep.subr.mxu0 0.0
    %216 = vmatpush2.msra.mxu0 0.0
    %217 = vmatprep.subr.mxu0 0.0
    %218 = vmatpush2.msra.mxu0 0.0
    %219 = vmatprep.subr.mxu0 0.0
    %220 = vmatpush2.msra.mxu0 0.0
    %221 = vmatprep.subr.mxu0 0.0
    %222 = vmatpush2.msra.mxu0 0.0
    %223 = vmatprep.subr.mxu0 0.0
    %224 = vmatpush2.msra.mxu0 0.0
    %225 = vmatprep.subr.mxu0 0.0
    %226 = vmatpush2.msra.mxu0 0.0
    %227 = vmatprep.subr.mxu0 0.0
    %228 = vmatpush2.msra.mxu0 0.0
    %229 = vmatprep.subr.mxu0 0.0
    %230 = vmatpush2.msra.mxu0 0.0
    %231 = vmatprep.subr.mxu0 0.0
    %232 = vmatpush2.msra.mxu0 0.0
    %233 = vmatprep.subr.mxu0 0.0
    %234 = vmatpush2.msra.mxu0 0.0
    %235 = vmatprep.subr.mxu0 0.0
    %236 = vmatpush2.msra.mxu0 0.0
    %237 = vmatprep.subr.mxu0 0.0
    %238 = vmatpush2.msra.mxu0 0.0
    %239 = vmatprep.subr.mxu0 0.0
    %240 = vmatpush2.msra.mxu0 0.0
    %241 = vmatprep.subr.mxu0 0.0
    %242 = vmatpush2.msra.mxu0 0.0
    %243 = vmatprep.subr.mxu0 0.0
    %244 = vmatpush2.msra.mxu0 0.0
    %245 = vmatprep.subr.mxu0 0.0
    %246 = vmatpush2.msra.mxu0 0.0
    %247 = vmatprep.mubr.f32.mxu0 0.0
    %248 = vmatmul.mubr.f32.gmra.mxu0 %v181
    %v249 = vpop.f32.mrf.mxu0
    %v250 = vadd.f32 0.0, %v249
    %v251 = vpop.f32.mrf.mxu0
    %v252 = vadd.f32 0.0, %v251
    %253 = vdwg.mxu0
    %254 = vmatprep.subr.mxu0 0.0
    %255 = vmatpush1.msra.mxu0 0.0
    %256 = vmatprep.subr.mxu0 0.0
    %257 = vmatpush1.msra.mxu0 0.0
    %258 = vmatprep.subr.mxu0 0.0
    %259 = vmatpush1.msra.mxu0 0.0
    %260 = vmatprep.subr.mxu0 0.0
    %261 = vmatpush1.msra.mxu0 0.0
    %262 = vmatprep.subr.mxu0 0.0
    %263 = vmatpush1.msra.mxu0 0.0
    %264 = vmatprep.subr.mxu0 0.0
    %265 = vmatpush1.msra.mxu0 0.0
    %266 = vmatprep.subr.mxu0 0.0
    %267 = vmatpush1.msra.mxu0 0.0
    %268 = vmatprep.subr.mxu0 0.0
    %269 = vmatpush1.msra.mxu0 0.0
    %270 = vmatprep.subr.mxu0 0.0
    %271 = vmatpush1.msra.mxu0 0.0
    %272 = vmatprep.subr.mxu0 0.0
    %273 = vmatpush1.msra.mxu0 0.0
    %274 = vmatprep.subr.mxu0 0.0
    %275 = vmatpush1.msra.mxu0 0.0
    %276 = vmatprep.subr.mxu0 0.0
    %277 = vmatpush1.msra.mxu0 0.0
    %278 = vmatprep.subr.mxu0 0.0
    %279 = vmatpush1.msra.mxu0 0.0
    %280 = vmatprep.subr.mxu0 0.0
    %281 = vmatpush1.msra.mxu0 0.0
    %282 = vmatprep.subr.mxu0 0.0
    %283 = vmatpush1.msra.mxu0 0.0
    %284 = vmatprep.subr.mxu0 %v172
    %285 = vmatpush1.msra.mxu0 %v171
    %286 = vmatprep.subr.mxu0 0.0
    %287 = vmatpush2.msra.mxu0 0.0
    %288 = vmatprep.subr.mxu0 0.0
    %289 = vmatpush2.msra.mxu0 0.0
    %290 = vmatprep.subr.mxu0 0.0
    %291 = vmatpush2.msra.mxu0 0.0
    %292 = vmatprep.subr.mxu0 0.0
    %293 = vmatpush2.msra.mxu0 0.0
    %294 = vmatprep.subr.mxu0 0.0
    %295 = vmatpush2.msra.mxu0 0.0
    %296 = vmatprep.subr.mxu0 0.0
    %297 = vmatpush2.msra.mxu0 0.0
    %298 = vmatprep.subr.mxu0 0.0
    %299 = vmatpush2.msra.mxu0 0.0
    %300 = vmatprep.subr.mxu0 0.0
    %301 = vmatpush2.msra.mxu0 0.0
    %302 = vmatprep.subr.mxu0 0.0
    %303 = vmatpush2.msra.mxu0 0.0
    %304 = vmatprep.subr.mxu0 0.0
    %305 = vmatpush2.msra.mxu0 0.0
    %306 = vmatprep.subr.mxu0 0.0
    %307 = vmatpush2.msra.mxu0 0.0
    %308 = vmatprep.subr.mxu0 0.0
    %309 = vmatpush2.msra.mxu0 0.0
    %310 = vmatprep.subr.mxu0 0.0
    %311 = vmatpush2.msra.mxu0 0.0
    %312 = vmatprep.subr.mxu0 0.0
    %313 = vmatpush2.msra.mxu0 0.0
    %314 = vmatprep.subr.mxu0 0.0
    %315 = vmatpush2.msra.mxu0 0.0
    %316 = vmatprep.subr.mxu0 0.0
    %317 = vmatpush2.msra.mxu0 0.0
    %318 = vmatprep.mubr.f32.mxu0 0.0
    %319 = vmatmul.mubr.f32.gmra.mxu0 %v181
    %v320 = vpop.f32.mrf.mxu0
    %v321 = vadd.f32 0.0, %v320
    %v322 = vpop.f32.mrf.mxu0
    %v323 = vadd.f32 0.0, %v322
    %324 = vdwg.mxu0
    %325 = vmatprep.subr.mxu0 0.0
    %326 = vmatpush1.msra.mxu0 0.0
    %327 = vmatprep.subr.mxu0 0.0
    %328 = vmatpush1.msra.mxu0 0.0
    %329 = vmatprep.subr.mxu0 0.0
    %330 = vmatpush1.msra.mxu0 0.0
    %331 = vmatprep.subr.mxu0 0.0
    %332 = vmatpush1.msra.mxu0 0.0
    %333 = vmatprep.subr.mxu0 0.0
    %334 = vmatpush1.msra.mxu0 0.0
    %335 = vmatprep.subr.mxu0 0.0
    %336 = vmatpush1.msra.mxu0 0.0
    %337 = vmatprep.subr.mxu0 0.0
    %338 = vmatpush1.msra.mxu0 0.0
    %339 = vmatprep.subr.mxu0 0.0
    %340 = vmatpush1.msra.mxu0 0.0
    %341 = vmatprep.subr.mxu0 0.0
    %342 = vmatpush1.msra.mxu0 0.0
    %343 = vmatprep.subr.mxu0 0.0
    %344 = vmatpush1.msra.mxu0 0.0
    %345 = vmatprep.subr.mxu0 0.0
    %346 = vmatpush1.msra.mxu0 0.0
    %347 = vmatprep.subr.mxu0 0.0
    %348 = vmatpush1.msra.mxu0 0.0
    %349 = vmatprep.subr.mxu0 0.0
    %350 = vmatpush1.msra.mxu0 0.0
    %351 = vmatprep.subr.mxu0 0.0
    %352 = vmatpush1.msra.mxu0 0.0
    %353 = vmatprep.subr.mxu0 0.0
    %354 = vmatpush1.msra.mxu0 0.0
    %355 = vmatprep.subr.mxu0 %v167
    %356 = vmatpush1.msra.mxu0 %v173
    %357 = vmatprep.subr.mxu0 0.0
    %358 = vmatpush2.msra.mxu0 0.0
    %359 = vmatprep.subr.mxu0 0.0
    %360 = vmatpush2.msra.mxu0 0.0
    %361 = vmatprep.subr.mxu0 0.0
    %362 = vmatpush2.msra.mxu0 0.0
    %363 = vmatprep.subr.mxu0 0.0
    %364 = vmatpush2.msra.mxu0 0.0
    %365 = vmatprep.subr.mxu0 0.0
    %366 = vmatpush2.msra.mxu0 0.0
    %367 = vmatprep.subr.mxu0 0.0
    %368 = vmatpush2.msra.mxu0 0.0
    %369 = vmatprep.subr.mxu0 0.0
    %370 = vmatpush2.msra.mxu0 0.0
    %371 = vmatprep.subr.mxu0 0.0
    %372 = vmatpush2.msra.mxu0 0.0
    %373 = vmatprep.subr.mxu0 0.0
    %374 = vmatpush2.msra.mxu0 0.0
    %375 = vmatprep.subr.mxu0 0.0
    %376 = vmatpush2.msra.mxu0 0.0
    %377 = vmatprep.subr.mxu0 0.0
    %378 = vmatpush2.msra.mxu0 0.0
    %379 = vmatprep.subr.mxu0 0.0
    %380 = vmatpush2.msra.mxu0 0.0
    %381 = vmatprep.subr.mxu0 0.0
    %382 = vmatpush2.msra.mxu0 0.0
    %383 = vmatprep.subr.mxu0 0.0
    %384 = vmatpush2.msra.mxu0 0.0
    %385 = vmatprep.subr.mxu0 0.0
    %386 = vmatpush2.msra.mxu0 0.0
    %387 = vmatprep.subr.mxu0 0.0
    %388 = vmatpush2.msra.mxu0 0.0
    %389 = vmatprep.mubr.f32.mxu0 0.0
    %390 = vmatmul.mubr.f32.gmra.mxu0 %v181
    %v391 = vpop.f32.mrf.mxu0
    %v392 = vadd.f32 0.0, %v391
    %v393 = vpop.f32.mrf.mxu0
    %v394 = vadd.f32 0.0, %v393
    %395 = vdwg.mxu0
    %396 = vrot.lane.b32.xlu0 %v141, 19
    %v397 = vpop.permute.xlu0 %396
    %398 = vrot.lane.b32.xlu0 %v142, 19
    %v399 = vpop.permute.xlu0 %398
    %400 = vrot.lane.b32.xlu0 %v143, 19
    %v401 = vpop.permute.xlu0 %400
    %402 = vrot.lane.b32.xlu0 %v144, 19
    %v403 = vpop.permute.xlu0 %402
    %404 = vrot.lane.b32.xlu0 %v145, 19
    %v405 = vpop.permute.xlu0 %404
    %406 = vrot.lane.b32.xlu0 %v146, 19
    %v407 = vpop.permute.xlu0 %406
    %vm408 = vcmask 154624
    %v409 = vsel %vm408, %v397, %v399
    %v410 = vsel %vm408, %v399, %v401
    %v411 = vsel %vm408, %v401, %v403
    %v412 = vsel %vm408, %v403, %v405
    %v413 = vsel %vm408, %v405, %v407
    %v421 = vsel %vm34, %v147, 0
    %423 = vmatprep.subr.mxu0 0.0
    %424 = vmatpush1.msra.mxu0 0.0
    %425 = vmatprep.subr.mxu0 0.0
    %426 = vmatpush1.msra.mxu0 0.0
    %427 = vmatprep.subr.mxu0 0.0
    %428 = vmatpush1.msra.mxu0 0.0
    %429 = vmatprep.subr.mxu0 0.0
    %430 = vmatpush1.msra.mxu0 0.0
    %431 = vmatprep.subr.mxu0 0.0
    %432 = vmatpush1.msra.mxu0 0.0
    %433 = vmatprep.subr.mxu0 0.0
    %434 = vmatpush1.msra.mxu0 0.0
    %435 = vmatprep.subr.mxu0 0.0
    %436 = vmatpush1.msra.mxu0 0.0
    %437 = vmatprep.subr.mxu0 0.0
    %438 = vmatpush1.msra.mxu0 0.0
    %439 = vmatprep.subr.mxu0 0.0
    %440 = vmatpush1.msra.mxu0 0.0
    %441 = vmatprep.subr.mxu0 0.0
    %442 = vmatpush1.msra.mxu0 0.0
    %443 = vmatprep.subr.mxu0 0.0
    %444 = vmatpush1.msra.mxu0 0.0
    %445 = vmatprep.subr.mxu0 0.0
    %446 = vmatpush1.msra.mxu0 0.0
    %447 = vmatprep.subr.mxu0 0.0
    %448 = vmatpush1.msra.mxu0 0.0
    %449 = vmatprep.subr.mxu0 0.0
    %450 = vmatpush1.msra.mxu0 0.0
    %451 = vmatprep.subr.mxu0 0.0
    %452 = vmatpush1.msra.mxu0 0.0
    %453 = vmatprep.subr.mxu0 %v410
    %454 = vmatpush1.msra.mxu0 %v409
    %455 = vmatprep.subr.mxu0 0.0
    %456 = vmatpush2.msra.mxu0 0.0
    %457 = vmatprep.subr.mxu0 0.0
    %458 = vmatpush2.msra.mxu0 0.0
    %459 = vmatprep.subr.mxu0 0.0
    %460 = vmatpush2.msra.mxu0 0.0
    %461 = vmatprep.subr.mxu0 0.0
    %462 = vmatpush2.msra.mxu0 0.0
    %463 = vmatprep.subr.mxu0 0.0
    %464 = vmatpush2.msra.mxu0 0.0
    %465 = vmatprep.subr.mxu0 0.0
    %466 = vmatpush2.msra.mxu0 0.0
    %467 = vmatprep.subr.mxu0 0.0
    %468 = vmatpush2.msra.mxu0 0.0
    %469 = vmatprep.subr.mxu0 0.0
    %470 = vmatpush2.msra.mxu0 0.0
    %471 = vmatprep.subr.mxu0 0.0
    %472 = vmatpush2.msra.mxu0 0.0
    %473 = vmatprep.subr.mxu0 0.0
    %474 = vmatpush2.msra.mxu0 0.0
    %475 = vmatprep.subr.mxu0 0.0
    %476 = vmatpush2.msra.mxu0 0.0
    %477 = vmatprep.subr.mxu0 0.0
    %478 = vmatpush2.msra.mxu0 0.0
    %479 = vmatprep.subr.mxu0 0.0
    %480 = vmatpush2.msra.mxu0 0.0
    %481 = vmatprep.subr.mxu0 0.0
    %482 = vmatpush2.msra.mxu0 0.0
    %483 = vmatprep.subr.mxu0 0.0
    %484 = vmatpush2.msra.mxu0 0.0
    %485 = vmatprep.subr.mxu0 0.0
    %486 = vmatpush2.msra.mxu0 0.0
    %487 = vmatprep.mubr.f32.mxu0 0.0
    %488 = vmatmul.mubr.f32.gmra.mxu0 %v421
    %v489 = vpop.f32.mrf.mxu0
    %v490 = vadd.f32 %v250, %v489
    %v491 = vpop.f32.mrf.mxu0
    %v492 = vadd.f32 %v252, %v491
    %493 = vdwg.mxu0
    %494 = vmatprep.subr.mxu0 0.0
    %495 = vmatpush1.msra.mxu0 0.0
    %496 = vmatprep.subr.mxu0 0.0
    %497 = vmatpush1.msra.mxu0 0.0
    %498 = vmatprep.subr.mxu0 0.0
    %499 = vmatpush1.msra.mxu0 0.0
    %500 = vmatprep.subr.mxu0 0.0
    %501 = vmatpush1.msra.mxu0 0.0
    %502 = vmatprep.subr.mxu0 0.0
    %503 = vmatpush1.msra.mxu0 0.0
    %504 = vmatprep.subr.mxu0 0.0
    %505 = vmatpush1.msra.mxu0 0.0
    %506 = vmatprep.subr.mxu0 0.0
    %507 = vmatpush1.msra.mxu0 0.0
    %508 = vmatprep.subr.mxu0 0.0
    %509 = vmatpush1.msra.mxu0 0.0
    %510 = vmatprep.subr.mxu0 0.0
    %511 = vmatpush1.msra.mxu0 0.0
    %512 = vmatprep.subr.mxu0 0.0
    %513 = vmatpush1.msra.mxu0 0.0
    %514 = vmatprep.subr.mxu0 0.0
    %515 = vmatpush1.msra.mxu0 0.0
    %516 = vmatprep.subr.mxu0 0.0
    %517 = vmatpush1.msra.mxu0 0.0
    %518 = vmatprep.subr.mxu0 0.0
    %519 = vmatpush1.msra.mxu0 0.0
    %520 = vmatprep.subr.mxu0 0.0
    %521 = vmatpush1.msra.mxu0 0.0
    %522 = vmatprep.subr.mxu0 0.0
    %523 = vmatpush1.msra.mxu0 0.0
    %524 = vmatprep.subr.mxu0 %v412
    %525 = vmatpush1.msra.mxu0 %v411
    %526 = vmatprep.subr.mxu0 0.0
    %527 = vmatpush2.msra.mxu0 0.0
    %528 = vmatprep.subr.mxu0 0.0
    %529 = vmatpush2.msra.mxu0 0.0
    %530 = vmatprep.subr.mxu0 0.0
    %531 = vmatpush2.msra.mxu0 0.0
    %532 = vmatprep.subr.mxu0 0.0
    %533 = vmatpush2.msra.mxu0 0.0
    %534 = vmatprep.subr.mxu0 0.0
    %535 = vmatpush2.msra.mxu0 0.0
    %536 = vmatprep.subr.mxu0 0.0
    %537 = vmatpush2.msra.mxu0 0.0
    %538 = vmatprep.subr.mxu0 0.0
    %539 = vmatpush2.msra.mxu0 0.0
    %540 = vmatprep.subr.mxu0 0.0
    %541 = vmatpush2.msra.mxu0 0.0
    %542 = vmatprep.subr.mxu0 0.0
    %543 = vmatpush2.msra.mxu0 0.0
    %544 = vmatprep.subr.mxu0 0.0
    %545 = vmatpush2.msra.mxu0 0.0
    %546 = vmatprep.subr.mxu0 0.0
    %547 = vmatpush2.msra.mxu0 0.0
    %548 = vmatprep.subr.mxu0 0.0
    %549 = vmatpush2.msra.mxu0 0.0
    %550 = vmatprep.subr.mxu0 0.0
    %551 = vmatpush2.msra.mxu0 0.0
    %552 = vmatprep.subr.mxu0 0.0
    %553 = vmatpush2.msra.mxu0 0.0
    %554 = vmatprep.subr.mxu0 0.0
    %555 = vmatpush2.msra.mxu0 0.0
    %556 = vmatprep.subr.mxu0 0.0
    %557 = vmatpush2.msra.mxu0 0.0
    %558 = vmatprep.mubr.f32.mxu0 0.0
    %559 = vmatmul.mubr.f32.gmra.mxu0 %v421
    %v560 = vpop.f32.mrf.mxu0
    %v561 = vadd.f32 %v321, %v560
    %v562 = vpop.f32.mrf.mxu0
    %v563 = vadd.f32 %v323, %v562
    %564 = vdwg.mxu0
    %565 = vmatprep.subr.mxu0 0.0
    %566 = vmatpush1.msra.mxu0 0.0
    %567 = vmatprep.subr.mxu0 0.0
    %568 = vmatpush1.msra.mxu0 0.0
    %569 = vmatprep.subr.mxu0 0.0
    %570 = vmatpush1.msra.mxu0 0.0
    %571 = vmatprep.subr.mxu0 0.0
    %572 = vmatpush1.msra.mxu0 0.0
    %573 = vmatprep.subr.mxu0 0.0
    %574 = vmatpush1.msra.mxu0 0.0
    %575 = vmatprep.subr.mxu0 0.0
    %576 = vmatpush1.msra.mxu0 0.0
    %577 = vmatprep.subr.mxu0 0.0
    %578 = vmatpush1.msra.mxu0 0.0
    %579 = vmatprep.subr.mxu0 0.0
    %580 = vmatpush1.msra.mxu0 0.0
    %581 = vmatprep.subr.mxu0 0.0
    %582 = vmatpush1.msra.mxu0 0.0
    %583 = vmatprep.subr.mxu0 0.0
    %584 = vmatpush1.msra.mxu0 0.0
    %585 = vmatprep.subr.mxu0 0.0
    %586 = vmatpush1.msra.mxu0 0.0
    %587 = vmatprep.subr.mxu0 0.0
    %588 = vmatpush1.msra.mxu0 0.0
    %589 = vmatprep.subr.mxu0 0.0
    %590 = vmatpush1.msra.mxu0 0.0
    %591 = vmatprep.subr.mxu0 0.0
    %592 = vmatpush1.msra.mxu0 0.0
    %593 = vmatprep.subr.mxu0 0.0
    %594 = vmatpush1.msra.mxu0 0.0
    %595 = vmatprep.subr.mxu0 %v407
    %596 = vmatpush1.msra.mxu0 %v413
    %597 = vmatprep.subr.mxu0 0.0
    %598 = vmatpush2.msra.mxu0 0.0
    %599 = vmatprep.subr.mxu0 0.0
    %600 = vmatpush2.msra.mxu0 0.0
    %601 = vmatprep.subr.mxu0 0.0
    %602 = vmatpush2.msra.mxu0 0.0
    %603 = vmatprep.subr.mxu0 0.0
    %604 = vmatpush2.msra.mxu0 0.0
    %605 = vmatprep.subr.mxu0 0.0
    %606 = vmatpush2.msra.mxu0 0.0
    %607 = vmatprep.subr.mxu0 0.0
    %608 = vmatpush2.msra.mxu0 0.0
    %609 = vmatprep.subr.mxu0 0.0
    %610 = vmatpush2.msra.mxu0 0.0
    %611 = vmatprep.subr.mxu0 0.0
    %612 = vmatpush2.msra.mxu0 0.0
    %613 = vmatprep.subr.mxu0 0.0
    %614 = vmatpush2.msra.mxu0 0.0
    %615 = vmatprep.subr.mxu0 0.0
    %616 = vmatpush2.msra.mxu0 0.0
    %617 = vmatprep.subr.mxu0 0.0
    %618 = vmatpush2.msra.mxu0 0.0
    %619 = vmatprep.subr.mxu0 0.0
    %620 = vmatpush2.msra.mxu0 0.0
    %621 = vmatprep.subr.mxu0 0.0
    %622 = vmatpush2.msra.mxu0 0.0
    %623 = vmatprep.subr.mxu0 0.0
    %624 = vmatpush2.msra.mxu0 0.0
    %625 = vmatprep.subr.mxu0 0.0
    %626 = vmatpush2.msra.mxu0 0.0
    %627 = vmatprep.subr.mxu0 0.0
    %628 = vmatpush2.msra.mxu0 0.0
    %629 = vmatprep.mubr.f32.mxu0 0.0
    %630 = vmatmul.mubr.f32.gmra.mxu0 %v421
    %v631 = vpop.f32.mrf.mxu0
    %v632 = vadd.f32 %v392, %v631
    %v633 = vpop.f32.mrf.mxu0
    %v634 = vadd.f32 %v394, %v633
    %635 = vdwg.mxu0
    %s636 = scalar_lea.vmem %s4, 16
    %v637 = vld [vmem:[%s636] sm:$0xff]
    %638 = vrot.lane.b32.xlu0 %v141, 17
    %v639 = vpop.permute.xlu0 %638
    %640 = vrot.lane.b32.xlu0 %v142, 17
    %v641 = vpop.permute.xlu0 %640
    %642 = vrot.lane.b32.xlu0 %v143, 17
    %v643 = vpop.permute.xlu0 %642
    %644 = vrot.lane.b32.xlu0 %v144, 17
    %v645 = vpop.permute.xlu0 %644
    %646 = vrot.lane.b32.xlu0 %v145, 17
    %v647 = vpop.permute.xlu0 %646
    %648 = vrot.lane.b32.xlu0 %v146, 17
    %v649 = vpop.permute.xlu0 %648
    %vm650 = vcmask 138240
    %v651 = vsel %vm650, %v639, %v641
    %v652 = vsel %vm650, %v641, %v643
    %v653 = vsel %vm650, %v643, %v645
    %v654 = vsel %vm650, %v645, %v647
    %v655 = vsel %vm650, %v647, %v649
    %v663 = vsel %vm34, %v637, 0
    %665 = vmatprep.subr.mxu0 0.0
    %666 = vmatpush1.msra.mxu0 0.0
    %667 = vmatprep.subr.mxu0 0.0
    %668 = vmatpush1.msra.mxu0 0.0
    %669 = vmatprep.subr.mxu0 0.0
    %670 = vmatpush1.msra.mxu0 0.0
    %671 = vmatprep.subr.mxu0 0.0
    %672 = vmatpush1.msra.mxu0 0.0
    %673 = vmatprep.subr.mxu0 0.0
    %674 = vmatpush1.msra.mxu0 0.0
    %675 = vmatprep.subr.mxu0 0.0
    %676 = vmatpush1.msra.mxu0 0.0
    %677 = vmatprep.subr.mxu0 0.0
    %678 = vmatpush1.msra.mxu0 0.0
    %679 = vmatprep.subr.mxu0 0.0
    %680 = vmatpush1.msra.mxu0 0.0
    %681 = vmatprep.subr.mxu0 0.0
    %682 = vmatpush1.msra.mxu0 0.0
    %683 = vmatprep.subr.mxu0 0.0
    %684 = vmatpush1.msra.mxu0 0.0
    %685 = vmatprep.subr.mxu0 0.0
    %686 = vmatpush1.msra.mxu0 0.0
    %687 = vmatprep.subr.mxu0 0.0
    %688 = vmatpush1.msra.mxu0 0.0
    %689 = vmatprep.subr.mxu0 0.0
    %690 = vmatpush1.msra.mxu0 0.0
    %691 = vmatprep.subr.mxu0 0.0
    %692 = vmatpush1.msra.mxu0 0.0
    %693 = vmatprep.subr.mxu0 0.0
    %694 = vmatpush1.msra.mxu0 0.0
    %695 = vmatprep.subr.mxu0 %v652
    %696 = vmatpush1.msra.mxu0 %v651
    %697 = vmatprep.subr.mxu0 0.0
    %698 = vmatpush2.msra.mxu0 0.0
    %699 = vmatprep.subr.mxu0 0.0
    %700 = vmatpush2.msra.mxu0 0.0
    %701 = vmatprep.subr.mxu0 0.0
    %702 = vmatpush2.msra.mxu0 0.0
    %703 = vmatprep.subr.mxu0 0.0
    %704 = vmatpush2.msra.mxu0 0.0
    %705 = vmatprep.subr.mxu0 0.0
    %706 = vmatpush2.msra.mxu0 0.0
    %707 = vmatprep.subr.mxu0 0.0
    %708 = vmatpush2.msra.mxu0 0.0
    %709 = vmatprep.subr.mxu0 0.0
    %710 = vmatpush2.msra.mxu0 0.0
    %711 = vmatprep.subr.mxu0 0.0
    %712 = vmatpush2.msra.mxu0 0.0
    %713 = vmatprep.subr.mxu0 0.0
    %714 = vmatpush2.msra.mxu0 0.0
    %715 = vmatprep.subr.mxu0 0.0
    %716 = vmatpush2.msra.mxu0 0.0
    %717 = vmatprep.subr.mxu0 0.0
    %718 = vmatpush2.msra.mxu0 0.0
    %719 = vmatprep.subr.mxu0 0.0
    %720 = vmatpush2.msra.mxu0 0.0
    %721 = vmatprep.subr.mxu0 0.0
    %722 = vmatpush2.msra.mxu0 0.0
    %723 = vmatprep.subr.mxu0 0.0
    %724 = vmatpush2.msra.mxu0 0.0
    %725 = vmatprep.subr.mxu0 0.0
    %726 = vmatpush2.msra.mxu0 0.0
    %727 = vmatprep.subr.mxu0 0.0
    %728 = vmatpush2.msra.mxu0 0.0
    %729 = vmatprep.mubr.f32.mxu0 0.0
    %730 = vmatmul.mubr.f32.gmra.mxu0 %v663
    %v731 = vpop.f32.mrf.mxu0
    %v732 = vadd.f32 0.0, %v731
    %v733 = vpop.f32.mrf.mxu0
    %v734 = vadd.f32 0.0, %v733
    %735 = vdwg.mxu0
    %736 = vmatprep.subr.mxu0 0.0
    %737 = vmatpush1.msra.mxu0 0.0
    %738 = vmatprep.subr.mxu0 0.0
    %739 = vmatpush1.msra.mxu0 0.0
    %740 = vmatprep.subr.mxu0 0.0
    %741 = vmatpush1.msra.mxu0 0.0
    %742 = vmatprep.subr.mxu0 0.0
    %743 = vmatpush1.msra.mxu0 0.0
    %744 = vmatprep.subr.mxu0 0.0
    %745 = vmatpush1.msra.mxu0 0.0
    %746 = vmatprep.subr.mxu0 0.0
    %747 = vmatpush1.msra.mxu0 0.0
    %748 = vmatprep.subr.mxu0 0.0
    %749 = vmatpush1.msra.mxu0 0.0
    %750 = vmatprep.subr.mxu0 0.0
    %751 = vmatpush1.msra.mxu0 0.0
    %752 = vmatprep.subr.mxu0 0.0
    %753 = vmatpush1.msra.mxu0 0.0
    %754 = vmatprep.subr.mxu0 0.0
    %755 = vmatpush1.msra.mxu0 0.0
    %756 = vmatprep.subr.mxu0 0.0
    %757 = vmatpush1.msra.mxu0 0.0
    %758 = vmatprep.subr.mxu0 0.0
    %759 = vmatpush1.msra.mxu0 0.0
    %760 = vmatprep.subr.mxu0 0.0
    %761 = vmatpush1.msra.mxu0 0.0
    %762 = vmatprep.subr.mxu0 0.0
    %763 = vmatpush1.msra.mxu0 0.0
    %764 = vmatprep.subr.mxu0 0.0
    %765 = vmatpush1.msra.mxu0 0.0
    %766 = vmatprep.subr.mxu0 %v654
    %767 = vmatpush1.msra.mxu0 %v653
    %768 = vmatprep.subr.mxu0 0.0
    %769 = vmatpush2.msra.mxu0 0.0
    %770 = vmatprep.subr.mxu0 0.0
    %771 = vmatpush2.msra.mxu0 0.0
    %772 = vmatprep.subr.mxu0 0.0
    %773 = vmatpush2.msra.mxu0 0.0
    %774 = vmatprep.subr.mxu0 0.0
    %775 = vmatpush2.msra.mxu0 0.0
    %776 = vmatprep.subr.mxu0 0.0
    %777 = vmatpush2.msra.mxu0 0.0
    %778 = vmatprep.subr.mxu0 0.0
    %779 = vmatpush2.msra.mxu0 0.0
    %780 = vmatprep.subr.mxu0 0.0
    %781 = vmatpush2.msra.mxu0 0.0
    %782 = vmatprep.subr.mxu0 0.0
    %783 = vmatpush2.msra.mxu0 0.0
    %784 = vmatprep.subr.mxu0 0.0
    %785 = vmatpush2.msra.mxu0 0.0
    %786 = vmatprep.subr.mxu0 0.0
    %787 = vmatpush2.msra.mxu0 0.0
    %788 = vmatprep.subr.mxu0 0.0
    %789 = vmatpush2.msra.mxu0 0.0
    %790 = vmatprep.subr.mxu0 0.0
    %791 = vmatpush2.msra.mxu0 0.0
    %792 = vmatprep.subr.mxu0 0.0
    %793 = vmatpush2.msra.mxu0 0.0
    %794 = vmatprep.subr.mxu0 0.0
    %795 = vmatpush2.msra.mxu0 0.0
    %796 = vmatprep.subr.mxu0 0.0
    %797 = vmatpush2.msra.mxu0 0.0
    %798 = vmatprep.subr.mxu0 0.0
    %799 = vmatpush2.msra.mxu0 0.0
    %800 = vmatprep.mubr.f32.mxu0 0.0
    %801 = vmatmul.mubr.f32.gmra.mxu0 %v663
    %v802 = vpop.f32.mrf.mxu0
    %v803 = vadd.f32 0.0, %v802
    %v804 = vpop.f32.mrf.mxu0
    %v805 = vadd.f32 0.0, %v804
    %806 = vdwg.mxu0
    %807 = vmatprep.subr.mxu0 0.0
    %808 = vmatpush1.msra.mxu0 0.0
    %809 = vmatprep.subr.mxu0 0.0
    %810 = vmatpush1.msra.mxu0 0.0
    %811 = vmatprep.subr.mxu0 0.0
    %812 = vmatpush1.msra.mxu0 0.0
    %813 = vmatprep.subr.mxu0 0.0
    %814 = vmatpush1.msra.mxu0 0.0
    %815 = vmatprep.subr.mxu0 0.0
    %816 = vmatpush1.msra.mxu0 0.0
    %817 = vmatprep.subr.mxu0 0.0
    %818 = vmatpush1.msra.mxu0 0.0
    %819 = vmatprep.subr.mxu0 0.0
    %820 = vmatpush1.msra.mxu0 0.0
    %821 = vmatprep.subr.mxu0 0.0
    %822 = vmatpush1.msra.mxu0 0.0
    %823 = vmatprep.subr.mxu0 0.0
    %824 = vmatpush1.msra.mxu0 0.0
    %825 = vmatprep.subr.mxu0 0.0
    %826 = vmatpush1.msra.mxu0 0.0
    %827 = vmatprep.subr.mxu0 0.0
    %828 = vmatpush1.msra.mxu0 0.0
    %829 = vmatprep.subr.mxu0 0.0
    %830 = vmatpush1.msra.mxu0 0.0
    %831 = vmatprep.subr.mxu0 0.0
    %832 = vmatpush1.msra.mxu0 0.0
    %833 = vmatprep.subr.mxu0 0.0
    %834 = vmatpush1.msra.mxu0 0.0
    %835 = vmatprep.subr.mxu0 0.0
    %836 = vmatpush1.msra.mxu0 0.0
    %837 = vmatprep.subr.mxu0 %v649
    %838 = vmatpush1.msra.mxu0 %v655
    %839 = vmatprep.subr.mxu0 0.0
    %840 = vmatpush2.msra.mxu0 0.0
    %841 = vmatprep.subr.mxu0 0.0
    %842 = vmatpush2.msra.mxu0 0.0
    %843 = vmatprep.subr.mxu0 0.0
    %844 = vmatpush2.msra.mxu0 0.0
    %845 = vmatprep.subr.mxu0 0.0
    %846 = vmatpush2.msra.mxu0 0.0
    %847 = vmatprep.subr.mxu0 0.0
    %848 = vmatpush2.msra.mxu0 0.0
    %849 = vmatprep.subr.mxu0 0.0
    %850 = vmatpush2.msra.mxu0 0.0
    %851 = vmatprep.subr.mxu0 0.0
    %852 = vmatpush2.msra.mxu0 0.0
    %853 = vmatprep.subr.mxu0 0.0
    %854 = vmatpush2.msra.mxu0 0.0
    %855 = vmatprep.subr.mxu0 0.0
    %856 = vmatpush2.msra.mxu0 0.0
    %857 = vmatprep.subr.mxu0 0.0
    %858 = vmatpush2.msra.mxu0 0.0
    %859 = vmatprep.subr.mxu0 0.0
    %860 = vmatpush2.msra.mxu0 0.0
    %861 = vmatprep.subr.mxu0 0.0
    %862 = vmatpush2.msra.mxu0 0.0
    %863 = vmatprep.subr.mxu0 0.0
    %864 = vmatpush2.msra.mxu0 0.0
    %865 = vmatprep.subr.mxu0 0.0
    %866 = vmatpush2.msra.mxu0 0.0
    %867 = vmatprep.subr.mxu0 0.0
    %868 = vmatpush2.msra.mxu0 0.0
    %869 = vmatprep.subr.mxu0 0.0
    %870 = vmatpush2.msra.mxu0 0.0
    %871 = vmatprep.mubr.f32.mxu0 0.0
    %872 = vmatmul.mubr.f32.gmra.mxu0 %v663
    %v873 = vpop.f32.mrf.mxu0
    %v874 = vadd.f32 0.0, %v873
    %v875 = vpop.f32.mrf.mxu0
    %v876 = vadd.f32 0.0, %v875
    %877 = vdwg.mxu0
    %v878 = vadd.f32 %v490, %v732
    %v879 = vadd.f32 %v492, %v734
    %v880 = vadd.f32 %v561, %v803
    %v881 = vadd.f32 %v563, %v805
    %v882 = vadd.f32 %v632, %v874
    %v883 = vadd.f32 %v634, %v876
    %v884 = vld [vmem:[#allocation2] sm:$0xff]
    %v885 = vld [vmem:[#allocation2 + $0x8] sm:$0xff]
    %v886 = vld [vmem:[#allocation2 + $0x10] sm:$0xff]
    %v887 = vld [vmem:[#allocation2 + $0x18] sm:$0xff]
    %v888 = vld [vmem:[#allocation2 + $0x20] sm:$0xff]
    %v889 = vld [vmem:[#allocation2 + $0x28] sm:$0xff]
    %v890 = vld [vmem:[#allocation2 + $0x30] sm:$0xff]
    %s891 = scalar_lea.vmem %s4, 24
    %v892 = vld [vmem:[%s891] sm:$0xff]
    %900 = vrot.lane.b32.xlu0 %v884, 1
    %v901 = vpop.permute.xlu0 %900
    %902 = vrot.lane.b32.xlu0 %v885, 1
    %v903 = vpop.permute.xlu0 %902
    %904 = vrot.lane.b32.xlu0 %v886, 1
    %v905 = vpop.permute.xlu0 %904
    %906 = vrot.lane.b32.xlu0 %v887, 1
    %v907 = vpop.permute.xlu0 %906
    %908 = vrot.lane.b32.xlu0 %v888, 1
    %v909 = vpop.permute.xlu0 %908
    %910 = vrot.lane.b32.xlu0 %v889, 1
    %v911 = vpop.permute.xlu0 %910
    %912 = vrot.lane.b32.xlu0 %v890, 1
    %v913 = vpop.permute.xlu0 %912
    %vm914 = vcmask 7168
    %v915 = vsel %vm914, %v901, %v903
    %v916 = vsel %vm914, %v903, %v905
    %v917 = vsel %vm914, %v905, %v907
    %v918 = vsel %vm914, %v907, %v909
    %v919 = vsel %vm914, %v909, %v911
    %v920 = vsel %vm914, %v911, %v913
    %v928 = vsel %vm34, %v892, 0
    %930 = vmatprep.subr.mxu0 0.0
    %931 = vmatpush1.msra.mxu0 0.0
    %932 = vmatprep.subr.mxu0 0.0
    %933 = vmatpush1.msra.mxu0 0.0
    %934 = vmatprep.subr.mxu0 0.0
    %935 = vmatpush1.msra.mxu0 0.0
    %936 = vmatprep.subr.mxu0 0.0
    %937 = vmatpush1.msra.mxu0 0.0
    %938 = vmatprep.subr.mxu0 0.0
    %939 = vmatpush1.msra.mxu0 0.0
    %940 = vmatprep.subr.mxu0 0.0
    %941 = vmatpush1.msra.mxu0 0.0
    %942 = vmatprep.subr.mxu0 0.0
    %943 = vmatpush1.msra.mxu0 0.0
    %944 = vmatprep.subr.mxu0 0.0
    %945 = vmatpush1.msra.mxu0 0.0
    %946 = vmatprep.subr.mxu0 0.0
    %947 = vmatpush1.msra.mxu0 0.0
    %948 = vmatprep.subr.mxu0 0.0
    %949 = vmatpush1.msra.mxu0 0.0
    %950 = vmatprep.subr.mxu0 0.0
    %951 = vmatpush1.msra.mxu0 0.0
    %952 = vmatprep.subr.mxu0 0.0
    %953 = vmatpush1.msra.mxu0 0.0
    %954 = vmatprep.subr.mxu0 0.0
    %955 = vmatpush1.msra.mxu0 0.0
    %956 = vmatprep.subr.mxu0 0.0
    %957 = vmatpush1.msra.mxu0 0.0
    %958 = vmatprep.subr.mxu0 0.0
    %959 = vmatpush1.msra.mxu0 0.0
    %960 = vmatprep.subr.mxu0 %v916
    %961 = vmatpush1.msra.mxu0 %v915
    %962 = vmatprep.subr.mxu0 0.0
    %963 = vmatpush2.msra.mxu0 0.0
    %964 = vmatprep.subr.mxu0 0.0
    %965 = vmatpush2.msra.mxu0 0.0
    %966 = vmatprep.subr.mxu0 0.0
    %967 = vmatpush2.msra.mxu0 0.0
    %968 = vmatprep.subr.mxu0 0.0
    %969 = vmatpush2.msra.mxu0 0.0
    %970 = vmatprep.subr.mxu0 0.0
    %971 = vmatpush2.msra.mxu0 0.0
    %972 = vmatprep.subr.mxu0 0.0
    %973 = vmatpush2.msra.mxu0 0.0
    %974 = vmatprep.subr.mxu0 0.0
    %975 = vmatpush2.msra.mxu0 0.0
    %976 = vmatprep.subr.mxu0 0.0
    %977 = vmatpush2.msra.mxu0 0.0
    %978 = vmatprep.subr.mxu0 0.0
    %979 = vmatpush2.msra.mxu0 0.0
    %980 = vmatprep.subr.mxu0 0.0
    %981 = vmatpush2.msra.mxu0 0.0
    %982 = vmatprep.subr.mxu0 0.0
    %983 = vmatpush2.msra.mxu0 0.0
    %984 = vmatprep.subr.mxu0 0.0
    %985 = vmatpush2.msra.mxu0 0.0
    %986 = vmatprep.subr.mxu0 0.0
    %987 = vmatpush2.msra.mxu0 0.0
    %988 = vmatprep.subr.mxu0 0.0
    %989 = vmatpush2.msra.mxu0 0.0
    %990 = vmatprep.subr.mxu0 0.0
    %991 = vmatpush2.msra.mxu0 0.0
    %992 = vmatprep.subr.mxu0 0.0
    %993 = vmatpush2.msra.mxu0 0.0
    %994 = vmatprep.mubr.f32.mxu0 0.0
    %995 = vmatmul.mubr.f32.gmra.mxu0 %v928
    %v996 = vpop.f32.mrf.mxu0
    %v997 = vadd.f32 0.0, %v996
    %v998 = vpop.f32.mrf.mxu0
    %v999 = vadd.f32 0.0, %v998
    %1000 = vdwg.mxu0
    %1001 = vmatprep.subr.mxu0 0.0
    %1002 = vmatpush1.msra.mxu0 0.0
    %1003 = vmatprep.subr.mxu0 0.0
    %1004 = vmatpush1.msra.mxu0 0.0
    %1005 = vmatprep.subr.mxu0 0.0
    %1006 = vmatpush1.msra.mxu0 0.0
    %1007 = vmatprep.subr.mxu0 0.0
    %1008 = vmatpush1.msra.mxu0 0.0
    %1009 = vmatprep.subr.mxu0 0.0
    %1010 = vmatpush1.msra.mxu0 0.0
    %1011 = vmatprep.subr.mxu0 0.0
    %1012 = vmatpush1.msra.mxu0 0.0
    %1013 = vmatprep.subr.mxu0 0.0
    %1014 = vmatpush1.msra.mxu0 0.0
    %1015 = vmatprep.subr.mxu0 0.0
    %1016 = vmatpush1.msra.mxu0 0.0
    %1017 = vmatprep.subr.mxu0 0.0
    %1018 = vmatpush1.msra.mxu0 0.0
    %1019 = vmatprep.subr.mxu0 0.0
    %1020 = vmatpush1.msra.mxu0 0.0
    %1021 = vmatprep.subr.mxu0 0.0
    %1022 = vmatpush1.msra.mxu0 0.0
    %1023 = vmatprep.subr.mxu0 0.0
    %1024 = vmatpush1.msra.mxu0 0.0
    %1025 = vmatprep.subr.mxu0 0.0
    %1026 = vmatpush1.msra.mxu0 0.0
    %1027 = vmatprep.subr.mxu0 0.0
    %1028 = vmatpush1.msra.mxu0 0.0
    %1029 = vmatprep.subr.mxu0 0.0
    %1030 = vmatpush1.msra.mxu0 0.0
    %1031 = vmatprep.subr.mxu0 %v918
    %1032 = vmatpush1.msra.mxu0 %v917
    %1033 = vmatprep.subr.mxu0 0.0
    %1034 = vmatpush2.msra.mxu0 0.0
    %1035 = vmatprep.subr.mxu0 0.0
    %1036 = vmatpush2.msra.mxu0 0.0
    %1037 = vmatprep.subr.mxu0 0.0
    %1038 = vmatpush2.msra.mxu0 0.0
    %1039 = vmatprep.subr.mxu0 0.0
    %1040 = vmatpush2.msra.mxu0 0.0
    %1041 = vmatprep.subr.mxu0 0.0
    %1042 = vmatpush2.msra.mxu0 0.0
    %1043 = vmatprep.subr.mxu0 0.0
    %1044 = vmatpush2.msra.mxu0 0.0
    %1045 = vmatprep.subr.mxu0 0.0
    %1046 = vmatpush2.msra.mxu0 0.0
    %1047 = vmatprep.subr.mxu0 0.0
    %1048 = vmatpush2.msra.mxu0 0.0
    %1049 = vmatprep.subr.mxu0 0.0
    %1050 = vmatpush2.msra.mxu0 0.0
    %1051 = vmatprep.subr.mxu0 0.0
    %1052 = vmatpush2.msra.mxu0 0.0
    %1053 = vmatprep.subr.mxu0 0.0
    %1054 = vmatpush2.msra.mxu0 0.0
    %1055 = vmatprep.subr.mxu0 0.0
    %1056 = vmatpush2.msra.mxu0 0.0
    %1057 = vmatprep.subr.mxu0 0.0
    %1058 = vmatpush2.msra.mxu0 0.0
    %1059 = vmatprep.subr.mxu0 0.0
    %1060 = vmatpush2.msra.mxu0 0.0
    %1061 = vmatprep.subr.mxu0 0.0
    %1062 = vmatpush2.msra.mxu0 0.0
    %1063 = vmatprep.subr.mxu0 0.0
    %1064 = vmatpush2.msra.mxu0 0.0
    %1065 = vmatprep.mubr.f32.mxu0 0.0
    %1066 = vmatmul.mubr.f32.gmra.mxu0 %v928
    %v1067 = vpop.f32.mrf.mxu0
    %v1068 = vadd.f32 0.0, %v1067
    %v1069 = vpop.f32.mrf.mxu0
    %v1070 = vadd.f32 0.0, %v1069
    %1071 = vdwg.mxu0
    %1072 = vmatprep.subr.mxu0 0.0
    %1073 = vmatpush1.msra.mxu0 0.0
    %1074 = vmatprep.subr.mxu0 0.0
    %1075 = vmatpush1.msra.mxu0 0.0
    %1076 = vmatprep.subr.mxu0 0.0
    %1077 = vmatpush1.msra.mxu0 0.0
    %1078 = vmatprep.subr.mxu0 0.0
    %1079 = vmatpush1.msra.mxu0 0.0
    %1080 = vmatprep.subr.mxu0 0.0
    %1081 = vmatpush1.msra.mxu0 0.0
    %1082 = vmatprep.subr.mxu0 0.0
    %1083 = vmatpush1.msra.mxu0 0.0
    %1084 = vmatprep.subr.mxu0 0.0
    %1085 = vmatpush1.msra.mxu0 0.0
    %1086 = vmatprep.subr.mxu0 0.0
    %1087 = vmatpush1.msra.mxu0 0.0
    %1088 = vmatprep.subr.mxu0 0.0
    %1089 = vmatpush1.msra.mxu0 0.0
    %1090 = vmatprep.subr.mxu0 0.0
    %1091 = vmatpush1.msra.mxu0 0.0
    %1092 = vmatprep.subr.mxu0 0.0
    %1093 = vmatpush1.msra.mxu0 0.0
    %1094 = vmatprep.subr.mxu0 0.0
    %1095 = vmatpush1.msra.mxu0 0.0
    %1096 = vmatprep.subr.mxu0 0.0
    %1097 = vmatpush1.msra.mxu0 0.0
    %1098 = vmatprep.subr.mxu0 0.0
    %1099 = vmatpush1.msra.mxu0 0.0
    %1100 = vmatprep.subr.mxu0 0.0
    %1101 = vmatpush1.msra.mxu0 0.0
    %1102 = vmatprep.subr.mxu0 %v920
    %1103 = vmatpush1.msra.mxu0 %v919
    %1104 = vmatprep.subr.mxu0 0.0
    %1105 = vmatpush2.msra.mxu0 0.0
    %1106 = vmatprep.subr.mxu0 0.0
    %1107 = vmatpush2.msra.mxu0 0.0
    %1108 = vmatprep.subr.mxu0 0.0
    %1109 = vmatpush2.msra.mxu0 0.0
    %1110 = vmatprep.subr.mxu0 0.0
    %1111 = vmatpush2.msra.mxu0 0.0
    %1112 = vmatprep.subr.mxu0 0.0
    %1113 = vmatpush2.msra.mxu0 0.0
    %1114 = vmatprep.subr.mxu0 0.0
    %1115 = vmatpush2.msra.mxu0 0.0
    %1116 = vmatprep.subr.mxu0 0.0
    %1117 = vmatpush2.msra.mxu0 0.0
    %1118 = vmatprep.subr.mxu0 0.0
    %1119 = vmatpush2.msra.mxu0 0.0
    %1120 = vmatprep.subr.mxu0 0.0
    %1121 = vmatpush2.msra.mxu0 0.0
    %1122 = vmatprep.subr.mxu0 0.0
    %1123 = vmatpush2.msra.mxu0 0.0
    %1124 = vmatprep.subr.mxu0 0.0
    %1125 = vmatpush2.msra.mxu0 0.0
    %1126 = vmatprep.subr.mxu0 0.0
    %1127 = vmatpush2.msra.mxu0 0.0
    %1128 = vmatprep.subr.mxu0 0.0
    %1129 = vmatpush2.msra.mxu0 0.0
    %1130 = vmatprep.subr.mxu0 0.0
    %1131 = vmatpush2.msra.mxu0 0.0
    %1132 = vmatprep.subr.mxu0 0.0
    %1133 = vmatpush2.msra.mxu0 0.0
    %1134 = vmatprep.subr.mxu0 0.0
    %1135 = vmatpush2.msra.mxu0 0.0
    %1136 = vmatprep.mubr.f32.mxu0 0.0
    %1137 = vmatmul.mubr.f32.gmra.mxu0 %v928
    %v1138 = vpop.f32.mrf.mxu0
    %v1139 = vadd.f32 0.0, %v1138
    %v1140 = vpop.f32.mrf.mxu0
    %v1141 = vadd.f32 0.0, %v1140
    %1142 = vdwg.mxu0
    %v1143 = vadd.f32 %v878, %v997
    %v1144 = vadd.f32 %v879, %v999
    %v1145 = vadd.f32 %v880, %v1068
    %v1146 = vadd.f32 %v881, %v1070
    %v1147 = vadd.f32 %v882, %v1139
    %v1148 = vadd.f32 %v883, %v1141
    %s1149 = scalar_lea.vmem %s4, 32
    %v1150 = vld [vmem:[%s1149] sm:$0xff]
    %v1152 = vsel %vm34, %v1150, 0
    %1154 = vmatprep.subr.mxu0 0.0
    %1155 = vmatpush1.msra.mxu0 0.0
    %1156 = vmatprep.subr.mxu0 0.0
    %1157 = vmatpush1.msra.mxu0 0.0
    %1158 = vmatprep.subr.mxu0 0.0
    %1159 = vmatpush1.msra.mxu0 0.0
    %1160 = vmatprep.subr.mxu0 0.0
    %1161 = vmatpush1.msra.mxu0 0.0
    %1162 = vmatprep.subr.mxu0 0.0
    %1163 = vmatpush1.msra.mxu0 0.0
    %1164 = vmatprep.subr.mxu0 0.0
    %1165 = vmatpush1.msra.mxu0 0.0
    %1166 = vmatprep.subr.mxu0 0.0
    %1167 = vmatpush1.msra.mxu0 0.0
    %1168 = vmatprep.subr.mxu0 0.0
    %1169 = vmatpush1.msra.mxu0 0.0
    %1170 = vmatprep.subr.mxu0 0.0
    %1171 = vmatpush1.msra.mxu0 0.0
    %1172 = vmatprep.subr.mxu0 0.0
    %1173 = vmatpush1.msra.mxu0 0.0
    %1174 = vmatprep.subr.mxu0 0.0
    %1175 = vmatpush1.msra.mxu0 0.0
    %1176 = vmatprep.subr.mxu0 0.0
    %1177 = vmatpush1.msra.mxu0 0.0
    %1178 = vmatprep.subr.mxu0 0.0
    %1179 = vmatpush1.msra.mxu0 0.0
    %1180 = vmatprep.subr.mxu0 0.0
    %1181 = vmatpush1.msra.mxu0 0.0
    %1182 = vmatprep.subr.mxu0 0.0
    %1183 = vmatpush1.msra.mxu0 0.0
    %1184 = vmatprep.subr.mxu0 %v886
    %1185 = vmatpush1.msra.mxu0 %v885
    %1186 = vmatprep.subr.mxu0 0.0
    %1187 = vmatpush2.msra.mxu0 0.0
    %1188 = vmatprep.subr.mxu0 0.0
    %1189 = vmatpush2.msra.mxu0 0.0
    %1190 = vmatprep.subr.mxu0 0.0
    %1191 = vmatpush2.msra.mxu0 0.0
    %1192 = vmatprep.subr.mxu0 0.0
    %1193 = vmatpush2.msra.mxu0 0.0
    %1194 = vmatprep.subr.mxu0 0.0
    %1195 = vmatpush2.msra.mxu0 0.0
    %1196 = vmatprep.subr.mxu0 0.0
    %1197 = vmatpush2.msra.mxu0 0.0
    %1198 = vmatprep.subr.mxu0 0.0
    %1199 = vmatpush2.msra.mxu0 0.0
    %1200 = vmatprep.subr.mxu0 0.0
    %1201 = vmatpush2.msra.mxu0 0.0
    %1202 = vmatprep.subr.mxu0 0.0
    %1203 = vmatpush2.msra.mxu0 0.0
    %1204 = vmatprep.subr.mxu0 0.0
    %1205 = vmatpush2.msra.mxu0 0.0
    %1206 = vmatprep.subr.mxu0 0.0
    %1207 = vmatpush2.msra.mxu0 0.0
    %1208 = vmatprep.subr.mxu0 0.0
    %1209 = vmatpush2.msra.mxu0 0.0
    %1210 = vmatprep.subr.mxu0 0.0
    %1211 = vmatpush2.msra.mxu0 0.0
    %1212 = vmatprep.subr.mxu0 0.0
    %1213 = vmatpush2.msra.mxu0 0.0
    %1214 = vmatprep.subr.mxu0 0.0
    %1215 = vmatpush2.msra.mxu0 0.0
    %1216 = vmatprep.subr.mxu0 0.0
    %1217 = vmatpush2.msra.mxu0 0.0
    %1218 = vmatprep.mubr.f32.mxu0 0.0
    %1219 = vmatmul.mubr.f32.gmra.mxu0 %v1152
    %v1220 = vpop.f32.mrf.mxu0
    %v1221 = vadd.f32 0.0, %v1220
    %v1222 = vpop.f32.mrf.mxu0
    %v1223 = vadd.f32 0.0, %v1222
    %1224 = vdwg.mxu0
    %1225 = vmatprep.subr.mxu0 0.0
    %1226 = vmatpush1.msra.mxu0 0.0
    %1227 = vmatprep.subr.mxu0 0.0
    %1228 = vmatpush1.msra.mxu0 0.0
    %1229 = vmatprep.subr.mxu0 0.0
    %1230 = vmatpush1.msra.mxu0 0.0
    %1231 = vmatprep.subr.mxu0 0.0
    %1232 = vmatpush1.msra.mxu0 0.0
    %1233 = vmatprep.subr.mxu0 0.0
    %1234 = vmatpush1.msra.mxu0 0.0
    %1235 = vmatprep.subr.mxu0 0.0
    %1236 = vmatpush1.msra.mxu0 0.0
    %1237 = vmatprep.subr.mxu0 0.0
    %1238 = vmatpush1.msra.mxu0 0.0
    %1239 = vmatprep.subr.mxu0 0.0
    %1240 = vmatpush1.msra.mxu0 0.0
    %1241 = vmatprep.subr.mxu0 0.0
    %1242 = vmatpush1.msra.mxu0 0.0
    %1243 = vmatprep.subr.mxu0 0.0
    %1244 = vmatpush1.msra.mxu0 0.0
    %1245 = vmatprep.subr.mxu0 0.0
    %1246 = vmatpush1.msra.mxu0 0.0
    %1247 = vmatprep.subr.mxu0 0.0
    %1248 = vmatpush1.msra.mxu0 0.0
    %1249 = vmatprep.subr.mxu0 0.0
    %1250 = vmatpush1.msra.mxu0 0.0
    %1251 = vmatprep.subr.mxu0 0.0
    %1252 = vmatpush1.msra.mxu0 0.0
    %1253 = vmatprep.subr.mxu0 0.0
    %1254 = vmatpush1.msra.mxu0 0.0
    %1255 = vmatprep.subr.mxu0 %v888
    %1256 = vmatpush1.msra.mxu0 %v887
    %1257 = vmatprep.subr.mxu0 0.0
    %1258 = vmatpush2.msra.mxu0 0.0
    %1259 = vmatprep.subr.mxu0 0.0
    %1260 = vmatpush2.msra.mxu0 0.0
    %1261 = vmatprep.subr.mxu0 0.0
    %1262 = vmatpush2.msra.mxu0 0.0
    %1263 = vmatprep.subr.mxu0 0.0
    %1264 = vmatpush2.msra.mxu0 0.0
    %1265 = vmatprep.subr.mxu0 0.0
    %1266 = vmatpush2.msra.mxu0 0.0
    %1267 = vmatprep.subr.mxu0 0.0
    %1268 = vmatpush2.msra.mxu0 0.0
    %1269 = vmatprep.subr.mxu0 0.0
    %1270 = vmatpush2.msra.mxu0 0.0
    %1271 = vmatprep.subr.mxu0 0.0
    %1272 = vmatpush2.msra.mxu0 0.0
    %1273 = vmatprep.subr.mxu0 0.0
    %1274 = vmatpush2.msra.mxu0 0.0
    %1275 = vmatprep.subr.mxu0 0.0
    %1276 = vmatpush2.msra.mxu0 0.0
    %1277 = vmatprep.subr.mxu0 0.0
    %1278 = vmatpush2.msra.mxu0 0.0
    %1279 = vmatprep.subr.mxu0 0.0
    %1280 = vmatpush2.msra.mxu0 0.0
    %1281 = vmatprep.subr.mxu0 0.0
    %1282 = vmatpush2.msra.mxu0 0.0
    %1283 = vmatprep.subr.mxu0 0.0
    %1284 = vmatpush2.msra.mxu0 0.0
    %1285 = vmatprep.subr.mxu0 0.0
    %1286 = vmatpush2.msra.mxu0 0.0
    %1287 = vmatprep.subr.mxu0 0.0
    %1288 = vmatpush2.msra.mxu0 0.0
    %1289 = vmatprep.mubr.f32.mxu0 0.0
    %1290 = vmatmul.mubr.f32.gmra.mxu0 %v1152
    %v1291 = vpop.f32.mrf.mxu0
    %v1292 = vadd.f32 0.0, %v1291
    %v1293 = vpop.f32.mrf.mxu0
    %v1294 = vadd.f32 0.0, %v1293
    %1295 = vdwg.mxu0
    %1296 = vmatprep.subr.mxu0 0.0
    %1297 = vmatpush1.msra.mxu0 0.0
    %1298 = vmatprep.subr.mxu0 0.0
    %1299 = vmatpush1.msra.mxu0 0.0
    %1300 = vmatprep.subr.mxu0 0.0
    %1301 = vmatpush1.msra.mxu0 0.0
    %1302 = vmatprep.subr.mxu0 0.0
    %1303 = vmatpush1.msra.mxu0 0.0
    %1304 = vmatprep.subr.mxu0 0.0
    %1305 = vmatpush1.msra.mxu0 0.0
    %1306 = vmatprep.subr.mxu0 0.0
    %1307 = vmatpush1.msra.mxu0 0.0
    %1308 = vmatprep.subr.mxu0 0.0
    %1309 = vmatpush1.msra.mxu0 0.0
    %1310 = vmatprep.subr.mxu0 0.0
    %1311 = vmatpush1.msra.mxu0 0.0
    %1312 = vmatprep.subr.mxu0 0.0
    %1313 = vmatpush1.msra.mxu0 0.0
    %1314 = vmatprep.subr.mxu0 0.0
    %1315 = vmatpush1.msra.mxu0 0.0
    %1316 = vmatprep.subr.mxu0 0.0
    %1317 = vmatpush1.msra.mxu0 0.0
    %1318 = vmatprep.subr.mxu0 0.0
    %1319 = vmatpush1.msra.mxu0 0.0
    %1320 = vmatprep.subr.mxu0 0.0
    %1321 = vmatpush1.msra.mxu0 0.0
    %1322 = vmatprep.subr.mxu0 0.0
    %1323 = vmatpush1.msra.mxu0 0.0
    %1324 = vmatprep.subr.mxu0 0.0
    %1325 = vmatpush1.msra.mxu0 0.0
    %1326 = vmatprep.subr.mxu0 %v890
    %1327 = vmatpush1.msra.mxu0 %v889
    %1328 = vmatprep.subr.mxu0 0.0
    %1329 = vmatpush2.msra.mxu0 0.0
    %1330 = vmatprep.subr.mxu0 0.0
    %1331 = vmatpush2.msra.mxu0 0.0
    %1332 = vmatprep.subr.mxu0 0.0
    %1333 = vmatpush2.msra.mxu0 0.0
    %1334 = vmatprep.subr.mxu0 0.0
    %1335 = vmatpush2.msra.mxu0 0.0
    %1336 = vmatprep.subr.mxu0 0.0
    %1337 = vmatpush2.msra.mxu0 0.0
    %1338 = vmatprep.subr.mxu0 0.0
    %1339 = vmatpush2.msra.mxu0 0.0
    %1340 = vmatprep.subr.mxu0 0.0
    %1341 = vmatpush2.msra.mxu0 0.0
    %1342 = vmatprep.subr.mxu0 0.0
    %1343 = vmatpush2.msra.mxu0 0.0
    %1344 = vmatprep.subr.mxu0 0.0
    %1345 = vmatpush2.msra.mxu0 0.0
    %1346 = vmatprep.subr.mxu0 0.0
    %1347 = vmatpush2.msra.mxu0 0.0
    %1348 = vmatprep.subr.mxu0 0.0
    %1349 = vmatpush2.msra.mxu0 0.0
    %1350 = vmatprep.subr.mxu0 0.0
    %1351 = vmatpush2.msra.mxu0 0.0
    %1352 = vmatprep.subr.mxu0 0.0
    %1353 = vmatpush2.msra.mxu0 0.0
    %1354 = vmatprep.subr.mxu0 0.0
    %1355 = vmatpush2.msra.mxu0 0.0
    %1356 = vmatprep.subr.mxu0 0.0
    %1357 = vmatpush2.msra.mxu0 0.0
    %1358 = vmatprep.subr.mxu0 0.0
    %1359 = vmatpush2.msra.mxu0 0.0
    %1360 = vmatprep.mubr.f32.mxu0 0.0
    %1361 = vmatmul.mubr.f32.gmra.mxu0 %v1152
    %v1362 = vpop.f32.mrf.mxu0
    %v1363 = vadd.f32 0.0, %v1362
    %v1364 = vpop.f32.mrf.mxu0
    %v1365 = vadd.f32 0.0, %v1364
    %1366 = vdwg.mxu0
    %v1367 = vadd.f32 %v1143, %v1221
    %v1368 = vadd.f32 %v1144, %v1223
    %v1369 = vadd.f32 %v1145, %v1292
    %v1370 = vadd.f32 %v1146, %v1294
    %v1371 = vadd.f32 %v1147, %v1363
    %v1372 = vadd.f32 %v1148, %v1365
    %s1373 = scalar_lea.vmem %s4, 40
    %v1374 = vld [vmem:[%s1373] sm:$0xff]
    %1375 = vrot.lane.b32.xlu0 %v885, 127
    %v1376 = vpop.permute.xlu0 %1375
    %1377 = vrot.lane.b32.xlu0 %v886, 127
    %v1378 = vpop.permute.xlu0 %1377
    %1379 = vrot.lane.b32.xlu0 %v887, 127
    %v1380 = vpop.permute.xlu0 %1379
    %1381 = vrot.lane.b32.xlu0 %v888, 127
    %v1382 = vpop.permute.xlu0 %1381
    %1383 = vrot.lane.b32.xlu0 %v889, 127
    %v1384 = vpop.permute.xlu0 %1383
    %1385 = vrot.lane.b32.xlu0 %v890, 127
    %v1386 = vpop.permute.xlu0 %1385
    %vm1387 = vcmask 1039360
    %v1388 = vsel %vm1387, %v1376, %v1378
    %v1389 = vsel %vm1387, %v1378, %v1380
    %v1390 = vsel %vm1387, %v1380, %v1382
    %v1391 = vsel %vm1387, %v1382, %v1384
    %v1392 = vsel %vm1387, %v1384, %v1386
    %v1400 = vsel %vm34, %v1374, 0
    %1402 = vmatprep.subr.mxu0 0.0
    %1403 = vmatpush1.msra.mxu0 0.0
    %1404 = vmatprep.subr.mxu0 0.0
    %1405 = vmatpush1.msra.mxu0 0.0
    %1406 = vmatprep.subr.mxu0 0.0
    %1407 = vmatpush1.msra.mxu0 0.0
    %1408 = vmatprep.subr.mxu0 0.0
    %1409 = vmatpush1.msra.mxu0 0.0
    %1410 = vmatprep.subr.mxu0 0.0
    %1411 = vmatpush1.msra.mxu0 0.0
    %1412 = vmatprep.subr.mxu0 0.0
    %1413 = vmatpush1.msra.mxu0 0.0
    %1414 = vmatprep.subr.mxu0 0.0
    %1415 = vmatpush1.msra.mxu0 0.0
    %1416 = vmatprep.subr.mxu0 0.0
    %1417 = vmatpush1.msra.mxu0 0.0
    %1418 = vmatprep.subr.mxu0 0.0
    %1419 = vmatpush1.msra.mxu0 0.0
    %1420 = vmatprep.subr.mxu0 0.0
    %1421 = vmatpush1.msra.mxu0 0.0
    %1422 = vmatprep.subr.mxu0 0.0
    %1423 = vmatpush1.msra.mxu0 0.0
    %1424 = vmatprep.subr.mxu0 0.0
    %1425 = vmatpush1.msra.mxu0 0.0
    %1426 = vmatprep.subr.mxu0 0.0
    %1427 = vmatpush1.msra.mxu0 0.0
    %1428 = vmatprep.subr.mxu0 0.0
    %1429 = vmatpush1.msra.mxu0 0.0
    %1430 = vmatprep.subr.mxu0 0.0
    %1431 = vmatpush1.msra.mxu0 0.0
    %1432 = vmatprep.subr.mxu0 %v1389
    %1433 = vmatpush1.msra.mxu0 %v1388
    %1434 = vmatprep.subr.mxu0 0.0
    %1435 = vmatpush2.msra.mxu0 0.0
    %1436 = vmatprep.subr.mxu0 0.0
    %1437 = vmatpush2.msra.mxu0 0.0
    %1438 = vmatprep.subr.mxu0 0.0
    %1439 = vmatpush2.msra.mxu0 0.0
    %1440 = vmatprep.subr.mxu0 0.0
    %1441 = vmatpush2.msra.mxu0 0.0
    %1442 = vmatprep.subr.mxu0 0.0
    %1443 = vmatpush2.msra.mxu0 0.0
    %1444 = vmatprep.subr.mxu0 0.0
    %1445 = vmatpush2.msra.mxu0 0.0
    %1446 = vmatprep.subr.mxu0 0.0
    %1447 = vmatpush2.msra.mxu0 0.0
    %1448 = vmatprep.subr.mxu0 0.0
    %1449 = vmatpush2.msra.mxu0 0.0
    %1450 = vmatprep.subr.mxu0 0.0
    %1451 = vmatpush2.msra.mxu0 0.0
    %1452 = vmatprep.subr.mxu0 0.0
    %1453 = vmatpush2.msra.mxu0 0.0
    %1454 = vmatprep.subr.mxu0 0.0
    %1455 = vmatpush2.msra.mxu0 0.0
    %1456 = vmatprep.subr.mxu0 0.0
    %1457 = vmatpush2.msra.mxu0 0.0
    %1458 = vmatprep.subr.mxu0 0.0
    %1459 = vmatpush2.msra.mxu0 0.0
    %1460 = vmatprep.subr.mxu0 0.0
    %1461 = vmatpush2.msra.mxu0 0.0
    %1462 = vmatprep.subr.mxu0 0.0
    %1463 = vmatpush2.msra.mxu0 0.0
    %1464 = vmatprep.subr.mxu0 0.0
    %1465 = vmatpush2.msra.mxu0 0.0
    %1466 = vmatprep.mubr.f32.mxu0 0.0
    %1467 = vmatmul.mubr.f32.gmra.mxu0 %v1400
    %v1468 = vpop.f32.mrf.mxu0
    %v1469 = vadd.f32 0.0, %v1468
    %v1470 = vpop.f32.mrf.mxu0
    %v1471 = vadd.f32 0.0, %v1470
    %1472 = vdwg.mxu0
    %1473 = vmatprep.subr.mxu0 0.0
    %1474 = vmatpush1.msra.mxu0 0.0
    %1475 = vmatprep.subr.mxu0 0.0
    %1476 = vmatpush1.msra.mxu0 0.0
    %1477 = vmatprep.subr.mxu0 0.0
    %1478 = vmatpush1.msra.mxu0 0.0
    %1479 = vmatprep.subr.mxu0 0.0
    %1480 = vmatpush1.msra.mxu0 0.0
    %1481 = vmatprep.subr.mxu0 0.0
    %1482 = vmatpush1.msra.mxu0 0.0
    %1483 = vmatprep.subr.mxu0 0.0
    %1484 = vmatpush1.msra.mxu0 0.0
    %1485 = vmatprep.subr.mxu0 0.0
    %1486 = vmatpush1.msra.mxu0 0.0
    %1487 = vmatprep.subr.mxu0 0.0
    %1488 = vmatpush1.msra.mxu0 0.0
    %1489 = vmatprep.subr.mxu0 0.0
    %1490 = vmatpush1.msra.mxu0 0.0
    %1491 = vmatprep.subr.mxu0 0.0
    %1492 = vmatpush1.msra.mxu0 0.0
    %1493 = vmatprep.subr.mxu0 0.0
    %1494 = vmatpush1.msra.mxu0 0.0
    %1495 = vmatprep.subr.mxu0 0.0
    %1496 = vmatpush1.msra.mxu0 0.0
    %1497 = vmatprep.subr.mxu0 0.0
    %1498 = vmatpush1.msra.mxu0 0.0
    %1499 = vmatprep.subr.mxu0 0.0
    %1500 = vmatpush1.msra.mxu0 0.0
    %1501 = vmatprep.subr.mxu0 0.0
    %1502 = vmatpush1.msra.mxu0 0.0
    %1503 = vmatprep.subr.mxu0 %v1391
    %1504 = vmatpush1.msra.mxu0 %v1390
    %1505 = vmatprep.subr.mxu0 0.0
    %1506 = vmatpush2.msra.mxu0 0.0
    %1507 = vmatprep.subr.mxu0 0.0
    %1508 = vmatpush2.msra.mxu0 0.0
    %1509 = vmatprep.subr.mxu0 0.0
    %1510 = vmatpush2.msra.mxu0 0.0
    %1511 = vmatprep.subr.mxu0 0.0
    %1512 = vmatpush2.msra.mxu0 0.0
    %1513 = vmatprep.subr.mxu0 0.0
    %1514 = vmatpush2.msra.mxu0 0.0
    %1515 = vmatprep.subr.mxu0 0.0
    %1516 = vmatpush2.msra.mxu0 0.0
    %1517 = vmatprep.subr.mxu0 0.0
    %1518 = vmatpush2.msra.mxu0 0.0
    %1519 = vmatprep.subr.mxu0 0.0
    %1520 = vmatpush2.msra.mxu0 0.0
    %1521 = vmatprep.subr.mxu0 0.0
    %1522 = vmatpush2.msra.mxu0 0.0
    %1523 = vmatprep.subr.mxu0 0.0
    %1524 = vmatpush2.msra.mxu0 0.0
    %1525 = vmatprep.subr.mxu0 0.0
    %1526 = vmatpush2.msra.mxu0 0.0
    %1527 = vmatprep.subr.mxu0 0.0
    %1528 = vmatpush2.msra.mxu0 0.0
    %1529 = vmatprep.subr.mxu0 0.0
    %1530 = vmatpush2.msra.mxu0 0.0
    %1531 = vmatprep.subr.mxu0 0.0
    %1532 = vmatpush2.msra.mxu0 0.0
    %1533 = vmatprep.subr.mxu0 0.0
    %1534 = vmatpush2.msra.mxu0 0.0
    %1535 = vmatprep.subr.mxu0 0.0
    %1536 = vmatpush2.msra.mxu0 0.0
    %1537 = vmatprep.mubr.f32.mxu0 0.0
    %1538 = vmatmul.mubr.f32.gmra.mxu0 %v1400
    %v1539 = vpop.f32.mrf.mxu0
    %v1540 = vadd.f32 0.0, %v1539
    %v1541 = vpop.f32.mrf.mxu0
    %v1542 = vadd.f32 0.0, %v1541
    %1543 = vdwg.mxu0
    %1544 = vmatprep.subr.mxu0 0.0
    %1545 = vmatpush1.msra.mxu0 0.0
    %1546 = vmatprep.subr.mxu0 0.0
    %1547 = vmatpush1.msra.mxu0 0.0
    %1548 = vmatprep.subr.mxu0 0.0
    %1549 = vmatpush1.msra.mxu0 0.0
    %1550 = vmatprep.subr.mxu0 0.0
    %1551 = vmatpush1.msra.mxu0 0.0
    %1552 = vmatprep.subr.mxu0 0.0
    %1553 = vmatpush1.msra.mxu0 0.0
    %1554 = vmatprep.subr.mxu0 0.0
    %1555 = vmatpush1.msra.mxu0 0.0
    %1556 = vmatprep.subr.mxu0 0.0
    %1557 = vmatpush1.msra.mxu0 0.0
    %1558 = vmatprep.subr.mxu0 0.0
    %1559 = vmatpush1.msra.mxu0 0.0
    %1560 = vmatprep.subr.mxu0 0.0
    %1561 = vmatpush1.msra.mxu0 0.0
    %1562 = vmatprep.subr.mxu0 0.0
    %1563 = vmatpush1.msra.mxu0 0.0
    %1564 = vmatprep.subr.mxu0 0.0
    %1565 = vmatpush1.msra.mxu0 0.0
    %1566 = vmatprep.subr.mxu0 0.0
    %1567 = vmatpush1.msra.mxu0 0.0
    %1568 = vmatprep.subr.mxu0 0.0
    %1569 = vmatpush1.msra.mxu0 0.0
    %1570 = vmatprep.subr.mxu0 0.0
    %1571 = vmatpush1.msra.mxu0 0.0
    %1572 = vmatprep.subr.mxu0 0.0
    %1573 = vmatpush1.msra.mxu0 0.0
    %1574 = vmatprep.subr.mxu0 %v1386
    %1575 = vmatpush1.msra.mxu0 %v1392
    %1576 = vmatprep.subr.mxu0 0.0
    %1577 = vmatpush2.msra.mxu0 0.0
    %1578 = vmatprep.subr.mxu0 0.0
    %1579 = vmatpush2.msra.mxu0 0.0
    %1580 = vmatprep.subr.mxu0 0.0
    %1581 = vmatpush2.msra.mxu0 0.0
    %1582 = vmatprep.subr.mxu0 0.0
    %1583 = vmatpush2.msra.mxu0 0.0
    %1584 = vmatprep.subr.mxu0 0.0
    %1585 = vmatpush2.msra.mxu0 0.0
    %1586 = vmatprep.subr.mxu0 0.0
    %1587 = vmatpush2.msra.mxu0 0.0
    %1588 = vmatprep.subr.mxu0 0.0
    %1589 = vmatpush2.msra.mxu0 0.0
    %1590 = vmatprep.subr.mxu0 0.0
    %1591 = vmatpush2.msra.mxu0 0.0
    %1592 = vmatprep.subr.mxu0 0.0
    %1593 = vmatpush2.msra.mxu0 0.0
    %1594 = vmatprep.subr.mxu0 0.0
    %1595 = vmatpush2.msra.mxu0 0.0
    %1596 = vmatprep.subr.mxu0 0.0
    %1597 = vmatpush2.msra.mxu0 0.0
    %1598 = vmatprep.subr.mxu0 0.0
    %1599 = vmatpush2.msra.mxu0 0.0
    %1600 = vmatprep.subr.mxu0 0.0
    %1601 = vmatpush2.msra.mxu0 0.0
    %1602 = vmatprep.subr.mxu0 0.0
    %1603 = vmatpush2.msra.mxu0 0.0
    %1604 = vmatprep.subr.mxu0 0.0
    %1605 = vmatpush2.msra.mxu0 0.0
    %1606 = vmatprep.subr.mxu0 0.0
    %1607 = vmatpush2.msra.mxu0 0.0
    %1608 = vmatprep.mubr.f32.mxu0 0.0
    %1609 = vmatmul.mubr.f32.gmra.mxu0 %v1400
    %v1610 = vpop.f32.mrf.mxu0
    %v1611 = vadd.f32 0.0, %v1610
    %v1612 = vpop.f32.mrf.mxu0
    %v1613 = vadd.f32 0.0, %v1612
    %1614 = vdwg.mxu0
    %v1615 = vadd.f32 %v1367, %v1469
    %v1616 = vadd.f32 %v1368, %v1471
    %v1617 = vadd.f32 %v1369, %v1540
    %v1618 = vadd.f32 %v1370, %v1542
    %v1619 = vadd.f32 %v1371, %v1611
    %v1620 = vadd.f32 %v1372, %v1613
    %s1621 = scalar_lea.vmem %s4, 48
    %v1622 = vld [vmem:[%s1621] sm:$0xff]
    %1623 = vrot.lane.b32.xlu0 %v885, 111
    %v1624 = vpop.permute.xlu0 %1623
    %1625 = vrot.lane.b32.xlu0 %v886, 111
    %v1626 = vpop.permute.xlu0 %1625
    %1627 = vrot.lane.b32.xlu0 %v887, 111
    %v1628 = vpop.permute.xlu0 %1627
    %1629 = vrot.lane.b32.xlu0 %v888, 111
    %v1630 = vpop.permute.xlu0 %1629
    %1631 = vrot.lane.b32.xlu0 %v889, 111
    %v1632 = vpop.permute.xlu0 %1631
    %1633 = vrot.lane.b32.xlu0 %v890, 111
    %v1634 = vpop.permute.xlu0 %1633
    %vm1635 = vcmask 908288
    %v1636 = vsel %vm1635, %v1624, %v1626
    %v1637 = vsel %vm1635, %v1626, %v1628
    %v1638 = vsel %vm1635, %v1628, %v1630
    %v1639 = vsel %vm1635, %v1630, %v1632
    %v1640 = vsel %vm1635, %v1632, %v1634
    %v1648 = vsel %vm34, %v1622, 0
    %1650 = vmatprep.subr.mxu0 0.0
    %1651 = vmatpush1.msra.mxu0 0.0
    %1652 = vmatprep.subr.mxu0 0.0
    %1653 = vmatpush1.msra.mxu0 0.0
    %1654 = vmatprep.subr.mxu0 0.0
    %1655 = vmatpush1.msra.mxu0 0.0
    %1656 = vmatprep.subr.mxu0 0.0
    %1657 = vmatpush1.msra.mxu0 0.0
    %1658 = vmatprep.subr.mxu0 0.0
    %1659 = vmatpush1.msra.mxu0 0.0
    %1660 = vmatprep.subr.mxu0 0.0
    %1661 = vmatpush1.msra.mxu0 0.0
    %1662 = vmatprep.subr.mxu0 0.0
    %1663 = vmatpush1.msra.mxu0 0.0
    %1664 = vmatprep.subr.mxu0 0.0
    %1665 = vmatpush1.msra.mxu0 0.0
    %1666 = vmatprep.subr.mxu0 0.0
    %1667 = vmatpush1.msra.mxu0 0.0
    %1668 = vmatprep.subr.mxu0 0.0
    %1669 = vmatpush1.msra.mxu0 0.0
    %1670 = vmatprep.subr.mxu0 0.0
    %1671 = vmatpush1.msra.mxu0 0.0
    %1672 = vmatprep.subr.mxu0 0.0
    %1673 = vmatpush1.msra.mxu0 0.0
    %1674 = vmatprep.subr.mxu0 0.0
    %1675 = vmatpush1.msra.mxu0 0.0
    %1676 = vmatprep.subr.mxu0 0.0
    %1677 = vmatpush1.msra.mxu0 0.0
    %1678 = vmatprep.subr.mxu0 0.0
    %1679 = vmatpush1.msra.mxu0 0.0
    %1680 = vmatprep.subr.mxu0 %v1637
    %1681 = vmatpush1.msra.mxu0 %v1636
    %1682 = vmatprep.subr.mxu0 0.0
    %1683 = vmatpush2.msra.mxu0 0.0
    %1684 = vmatprep.subr.mxu0 0.0
    %1685 = vmatpush2.msra.mxu0 0.0
    %1686 = vmatprep.subr.mxu0 0.0
    %1687 = vmatpush2.msra.mxu0 0.0
    %1688 = vmatprep.subr.mxu0 0.0
    %1689 = vmatpush2.msra.mxu0 0.0
    %1690 = vmatprep.subr.mxu0 0.0
    %1691 = vmatpush2.msra.mxu0 0.0
    %1692 = vmatprep.subr.mxu0 0.0
    %1693 = vmatpush2.msra.mxu0 0.0
    %1694 = vmatprep.subr.mxu0 0.0
    %1695 = vmatpush2.msra.mxu0 0.0
    %1696 = vmatprep.subr.mxu0 0.0
    %1697 = vmatpush2.msra.mxu0 0.0
    %1698 = vmatprep.subr.mxu0 0.0
    %1699 = vmatpush2.msra.mxu0 0.0
    %1700 = vmatprep.subr.mxu0 0.0
    %1701 = vmatpush2.msra.mxu0 0.0
    %1702 = vmatprep.subr.mxu0 0.0
    %1703 = vmatpush2.msra.mxu0 0.0
    %1704 = vmatprep.subr.mxu0 0.0
    %1705 = vmatpush2.msra.mxu0 0.0
    %1706 = vmatprep.subr.mxu0 0.0
    %1707 = vmatpush2.msra.mxu0 0.0
    %1708 = vmatprep.subr.mxu0 0.0
    %1709 = vmatpush2.msra.mxu0 0.0
    %1710 = vmatprep.subr.mxu0 0.0
    %1711 = vmatpush2.msra.mxu0 0.0
    %1712 = vmatprep.subr.mxu0 0.0
    %1713 = vmatpush2.msra.mxu0 0.0
    %1714 = vmatprep.mubr.f32.mxu0 0.0
    %1715 = vmatmul.mubr.f32.gmra.mxu0 %v1648
    %v1716 = vpop.f32.mrf.mxu0
    %v1717 = vadd.f32 0.0, %v1716
    %v1718 = vpop.f32.mrf.mxu0
    %v1719 = vadd.f32 0.0, %v1718
    %1720 = vdwg.mxu0
    %1721 = vmatprep.subr.mxu0 0.0
    %1722 = vmatpush1.msra.mxu0 0.0
    %1723 = vmatprep.subr.mxu0 0.0
    %1724 = vmatpush1.msra.mxu0 0.0
    %1725 = vmatprep.subr.mxu0 0.0
    %1726 = vmatpush1.msra.mxu0 0.0
    %1727 = vmatprep.subr.mxu0 0.0
    %1728 = vmatpush1.msra.mxu0 0.0
    %1729 = vmatprep.subr.mxu0 0.0
    %1730 = vmatpush1.msra.mxu0 0.0
    %1731 = vmatprep.subr.mxu0 0.0
    %1732 = vmatpush1.msra.mxu0 0.0
    %1733 = vmatprep.subr.mxu0 0.0
    %1734 = vmatpush1.msra.mxu0 0.0
    %1735 = vmatprep.subr.mxu0 0.0
    %1736 = vmatpush1.msra.mxu0 0.0
    %1737 = vmatprep.subr.mxu0 0.0
    %1738 = vmatpush1.msra.mxu0 0.0
    %1739 = vmatprep.subr.mxu0 0.0
    %1740 = vmatpush1.msra.mxu0 0.0
    %1741 = vmatprep.subr.mxu0 0.0
    %1742 = vmatpush1.msra.mxu0 0.0
    %1743 = vmatprep.subr.mxu0 0.0
    %1744 = vmatpush1.msra.mxu0 0.0
    %1745 = vmatprep.subr.mxu0 0.0
    %1746 = vmatpush1.msra.mxu0 0.0
    %1747 = vmatprep.subr.mxu0 0.0
    %1748 = vmatpush1.msra.mxu0 0.0
    %1749 = vmatprep.subr.mxu0 0.0
    %1750 = vmatpush1.msra.mxu0 0.0
    %1751 = vmatprep.subr.mxu0 %v1639
    %1752 = vmatpush1.msra.mxu0 %v1638
    %1753 = vmatprep.subr.mxu0 0.0
    %1754 = vmatpush2.msra.mxu0 0.0
    %1755 = vmatprep.subr.mxu0 0.0
    %1756 = vmatpush2.msra.mxu0 0.0
    %1757 = vmatprep.subr.mxu0 0.0
    %1758 = vmatpush2.msra.mxu0 0.0
    %1759 = vmatprep.subr.mxu0 0.0
    %1760 = vmatpush2.msra.mxu0 0.0
    %1761 = vmatprep.subr.mxu0 0.0
    %1762 = vmatpush2.msra.mxu0 0.0
    %1763 = vmatprep.subr.mxu0 0.0
    %1764 = vmatpush2.msra.mxu0 0.0
    %1765 = vmatprep.subr.mxu0 0.0
    %1766 = vmatpush2.msra.mxu0 0.0
    %1767 = vmatprep.subr.mxu0 0.0
    %1768 = vmatpush2.msra.mxu0 0.0
    %1769 = vmatprep.subr.mxu0 0.0
    %1770 = vmatpush2.msra.mxu0 0.0
    %1771 = vmatprep.subr.mxu0 0.0
    %1772 = vmatpush2.msra.mxu0 0.0
    %1773 = vmatprep.subr.mxu0 0.0
    %1774 = vmatpush2.msra.mxu0 0.0
    %1775 = vmatprep.subr.mxu0 0.0
    %1776 = vmatpush2.msra.mxu0 0.0
    %1777 = vmatprep.subr.mxu0 0.0
    %1778 = vmatpush2.msra.mxu0 0.0
    %1779 = vmatprep.subr.mxu0 0.0
    %1780 = vmatpush2.msra.mxu0 0.0
    %1781 = vmatprep.subr.mxu0 0.0
    %1782 = vmatpush2.msra.mxu0 0.0
    %1783 = vmatprep.subr.mxu0 0.0
    %1784 = vmatpush2.msra.mxu0 0.0
    %1785 = vmatprep.mubr.f32.mxu0 0.0
    %1786 = vmatmul.mubr.f32.gmra.mxu0 %v1648
    %v1787 = vpop.f32.mrf.mxu0
    %v1788 = vadd.f32 0.0, %v1787
    %v1789 = vpop.f32.mrf.mxu0
    %v1790 = vadd.f32 0.0, %v1789
    %1791 = vdwg.mxu0
    %1792 = vmatprep.subr.mxu0 0.0
    %1793 = vmatpush1.msra.mxu0 0.0
    %1794 = vmatprep.subr.mxu0 0.0
    %1795 = vmatpush1.msra.mxu0 0.0
    %1796 = vmatprep.subr.mxu0 0.0
    %1797 = vmatpush1.msra.mxu0 0.0
    %1798 = vmatprep.subr.mxu0 0.0
    %1799 = vmatpush1.msra.mxu0 0.0
    %1800 = vmatprep.subr.mxu0 0.0
    %1801 = vmatpush1.msra.mxu0 0.0
    %1802 = vmatprep.subr.mxu0 0.0
    %1803 = vmatpush1.msra.mxu0 0.0
    %1804 = vmatprep.subr.mxu0 0.0
    %1805 = vmatpush1.msra.mxu0 0.0
    %1806 = vmatprep.subr.mxu0 0.0
    %1807 = vmatpush1.msra.mxu0 0.0
    %1808 = vmatprep.subr.mxu0 0.0
    %1809 = vmatpush1.msra.mxu0 0.0
    %1810 = vmatprep.subr.mxu0 0.0
    %1811 = vmatpush1.msra.mxu0 0.0
    %1812 = vmatprep.subr.mxu0 0.0
    %1813 = vmatpush1.msra.mxu0 0.0
    %1814 = vmatprep.subr.mxu0 0.0
    %1815 = vmatpush1.msra.mxu0 0.0
    %1816 = vmatprep.subr.mxu0 0.0
    %1817 = vmatpush1.msra.mxu0 0.0
    %1818 = vmatprep.subr.mxu0 0.0
    %1819 = vmatpush1.msra.mxu0 0.0
    %1820 = vmatprep.subr.mxu0 0.0
    %1821 = vmatpush1.msra.mxu0 0.0
    %1822 = vmatprep.subr.mxu0 %v1634
    %1823 = vmatpush1.msra.mxu0 %v1640
    %1824 = vmatprep.subr.mxu0 0.0
    %1825 = vmatpush2.msra.mxu0 0.0
    %1826 = vmatprep.subr.mxu0 0.0
    %1827 = vmatpush2.msra.mxu0 0.0
    %1828 = vmatprep.subr.mxu0 0.0
    %1829 = vmatpush2.msra.mxu0 0.0
    %1830 = vmatprep.subr.mxu0 0.0
    %1831 = vmatpush2.msra.mxu0 0.0
    %1832 = vmatprep.subr.mxu0 0.0
    %1833 = vmatpush2.msra.mxu0 0.0
    %1834 = vmatprep.subr.mxu0 0.0
    %1835 = vmatpush2.msra.mxu0 0.0
    %1836 = vmatprep.subr.mxu0 0.0
    %1837 = vmatpush2.msra.mxu0 0.0
    %1838 = vmatprep.subr.mxu0 0.0
    %1839 = vmatpush2.msra.mxu0 0.0
    %1840 = vmatprep.subr.mxu0 0.0
    %1841 = vmatpush2.msra.mxu0 0.0
    %1842 = vmatprep.subr.mxu0 0.0
    %1843 = vmatpush2.msra.mxu0 0.0
    %1844 = vmatprep.subr.mxu0 0.0
    %1845 = vmatpush2.msra.mxu0 0.0
    %1846 = vmatprep.subr.mxu0 0.0
    %1847 = vmatpush2.msra.mxu0 0.0
    %1848 = vmatprep.subr.mxu0 0.0
    %1849 = vmatpush2.msra.mxu0 0.0
    %1850 = vmatprep.subr.mxu0 0.0
    %1851 = vmatpush2.msra.mxu0 0.0
    %1852 = vmatprep.subr.mxu0 0.0
    %1853 = vmatpush2.msra.mxu0 0.0
    %1854 = vmatprep.subr.mxu0 0.0
    %1855 = vmatpush2.msra.mxu0 0.0
    %1856 = vmatprep.mubr.f32.mxu0 0.0
    %1857 = vmatmul.mubr.f32.gmra.mxu0 %v1648
    %v1858 = vpop.f32.mrf.mxu0
    %v1859 = vadd.f32 0.0, %v1858
    %v1860 = vpop.f32.mrf.mxu0
    %v1861 = vadd.f32 0.0, %v1860
    %1862 = vdwg.mxu0
    %v1863 = vadd.f32 %v1615, %v1717
    %v1864 = vadd.f32 %v1616, %v1719
    %v1865 = vadd.f32 %v1617, %v1788
    %v1866 = vadd.f32 %v1618, %v1790
    %v1867 = vadd.f32 %v1619, %v1859
    %v1868 = vadd.f32 %v1620, %v1861
    %s1869 = scalar_lea.vmem %s4, 56
    %v1870 = vld [vmem:[%s1869] sm:$0xff]
    %1871 = vrot.lane.b32.xlu0 %v885, 110
    %v1872 = vpop.permute.xlu0 %1871
    %1873 = vrot.lane.b32.xlu0 %v886, 110
    %v1874 = vpop.permute.xlu0 %1873
    %1875 = vrot.lane.b32.xlu0 %v887, 110
    %v1876 = vpop.permute.xlu0 %1875
    %1877 = vrot.lane.b32.xlu0 %v888, 110
    %v1878 = vpop.permute.xlu0 %1877
    %1879 = vrot.lane.b32.xlu0 %v889, 110
    %v1880 = vpop.permute.xlu0 %1879
    %1881 = vrot.lane.b32.xlu0 %v890, 110
    %v1882 = vpop.permute.xlu0 %1881
    %vm1883 = vcmask 900096
    %v1884 = vsel %vm1883, %v1872, %v1874
    %v1885 = vsel %vm1883, %v1874, %v1876
    %v1886 = vsel %vm1883, %v1876, %v1878
    %v1887 = vsel %vm1883, %v1878, %v1880
    %v1888 = vsel %vm1883, %v1880, %v1882
    %v1896 = vsel %vm34, %v1870, 0
    %1898 = vmatprep.subr.mxu0 0.0
    %1899 = vmatpush1.msra.mxu0 0.0
    %1900 = vmatprep.subr.mxu0 0.0
    %1901 = vmatpush1.msra.mxu0 0.0
    %1902 = vmatprep.subr.mxu0 0.0
    %1903 = vmatpush1.msra.mxu0 0.0
    %1904 = vmatprep.subr.mxu0 0.0
    %1905 = vmatpush1.msra.mxu0 0.0
    %1906 = vmatprep.subr.mxu0 0.0
    %1907 = vmatpush1.msra.mxu0 0.0
    %1908 = vmatprep.subr.mxu0 0.0
    %1909 = vmatpush1.msra.mxu0 0.0
    %1910 = vmatprep.subr.mxu0 0.0
    %1911 = vmatpush1.msra.mxu0 0.0
    %1912 = vmatprep.subr.mxu0 0.0
    %1913 = vmatpush1.msra.mxu0 0.0
    %1914 = vmatprep.subr.mxu0 0.0
    %1915 = vmatpush1.msra.mxu0 0.0
    %1916 = vmatprep.subr.mxu0 0.0
    %1917 = vmatpush1.msra.mxu0 0.0
    %1918 = vmatprep.subr.mxu0 0.0
    %1919 = vmatpush1.msra.mxu0 0.0
    %1920 = vmatprep.subr.mxu0 0.0
    %1921 = vmatpush1.msra.mxu0 0.0
    %1922 = vmatprep.subr.mxu0 0.0
    %1923 = vmatpush1.msra.mxu0 0.0
    %1924 = vmatprep.subr.mxu0 0.0
    %1925 = vmatpush1.msra.mxu0 0.0
    %1926 = vmatprep.subr.mxu0 0.0
    %1927 = vmatpush1.msra.mxu0 0.0
    %1928 = vmatprep.subr.mxu0 %v1885
    %1929 = vmatpush1.msra.mxu0 %v1884
    %1930 = vmatprep.subr.mxu0 0.0
    %1931 = vmatpush2.msra.mxu0 0.0
    %1932 = vmatprep.subr.mxu0 0.0
    %1933 = vmatpush2.msra.mxu0 0.0
    %1934 = vmatprep.subr.mxu0 0.0
    %1935 = vmatpush2.msra.mxu0 0.0
    %1936 = vmatprep.subr.mxu0 0.0
    %1937 = vmatpush2.msra.mxu0 0.0
    %1938 = vmatprep.subr.mxu0 0.0
    %1939 = vmatpush2.msra.mxu0 0.0
    %1940 = vmatprep.subr.mxu0 0.0
    %1941 = vmatpush2.msra.mxu0 0.0
    %1942 = vmatprep.subr.mxu0 0.0
    %1943 = vmatpush2.msra.mxu0 0.0
    %1944 = vmatprep.subr.mxu0 0.0
    %1945 = vmatpush2.msra.mxu0 0.0
    %1946 = vmatprep.subr.mxu0 0.0
    %1947 = vmatpush2.msra.mxu0 0.0
    %1948 = vmatprep.subr.mxu0 0.0
    %1949 = vmatpush2.msra.mxu0 0.0
    %1950 = vmatprep.subr.mxu0 0.0
    %1951 = vmatpush2.msra.mxu0 0.0
    %1952 = vmatprep.subr.mxu0 0.0
    %1953 = vmatpush2.msra.mxu0 0.0
    %1954 = vmatprep.subr.mxu0 0.0
    %1955 = vmatpush2.msra.mxu0 0.0
    %1956 = vmatprep.subr.mxu0 0.0
    %1957 = vmatpush2.msra.mxu0 0.0
    %1958 = vmatprep.subr.mxu0 0.0
    %1959 = vmatpush2.msra.mxu0 0.0
    %1960 = vmatprep.subr.mxu0 0.0
    %1961 = vmatpush2.msra.mxu0 0.0
    %1962 = vmatprep.mubr.f32.mxu0 0.0
    %1963 = vmatmul.mubr.f32.gmra.mxu0 %v1896
    %v1964 = vpop.f32.mrf.mxu0
    %v1965 = vadd.f32 0.0, %v1964
    %v1966 = vpop.f32.mrf.mxu0
    %v1967 = vadd.f32 0.0, %v1966
    %1968 = vdwg.mxu0
    %1969 = vmatprep.subr.mxu0 0.0
    %1970 = vmatpush1.msra.mxu0 0.0
    %1971 = vmatprep.subr.mxu0 0.0
    %1972 = vmatpush1.msra.mxu0 0.0
    %1973 = vmatprep.subr.mxu0 0.0
    %1974 = vmatpush1.msra.mxu0 0.0
    %1975 = vmatprep.subr.mxu0 0.0
    %1976 = vmatpush1.msra.mxu0 0.0
    %1977 = vmatprep.subr.mxu0 0.0
    %1978 = vmatpush1.msra.mxu0 0.0
    %1979 = vmatprep.subr.mxu0 0.0
    %1980 = vmatpush1.msra.mxu0 0.0
    %1981 = vmatprep.subr.mxu0 0.0
    %1982 = vmatpush1.msra.mxu0 0.0
    %1983 = vmatprep.subr.mxu0 0.0
    %1984 = vmatpush1.msra.mxu0 0.0
    %1985 = vmatprep.subr.mxu0 0.0
    %1986 = vmatpush1.msra.mxu0 0.0
    %1987 = vmatprep.subr.mxu0 0.0
    %1988 = vmatpush1.msra.mxu0 0.0
    %1989 = vmatprep.subr.mxu0 0.0
    %1990 = vmatpush1.msra.mxu0 0.0
    %1991 = vmatprep.subr.mxu0 0.0
    %1992 = vmatpush1.msra.mxu0 0.0
    %1993 = vmatprep.subr.mxu0 0.0
    %1994 = vmatpush1.msra.mxu0 0.0
    %1995 = vmatprep.subr.mxu0 0.0
    %1996 = vmatpush1.msra.mxu0 0.0
    %1997 = vmatprep.subr.mxu0 0.0
    %1998 = vmatpush1.msra.mxu0 0.0
    %1999 = vmatprep.subr.mxu0 %v1887
    %2000 = vmatpush1.msra.mxu0 %v1886
    %2001 = vmatprep.subr.mxu0 0.0
    %2002 = vmatpush2.msra.mxu0 0.0
    %2003 = vmatprep.subr.mxu0 0.0
    %2004 = vmatpush2.msra.mxu0 0.0
    %2005 = vmatprep.subr.mxu0 0.0
    %2006 = vmatpush2.msra.mxu0 0.0
    %2007 = vmatprep.subr.mxu0 0.0
    %2008 = vmatpush2.msra.mxu0 0.0
    %2009 = vmatprep.subr.mxu0 0.0
    %2010 = vmatpush2.msra.mxu0 0.0
    %2011 = vmatprep.subr.mxu0 0.0
    %2012 = vmatpush2.msra.mxu0 0.0
    %2013 = vmatprep.subr.mxu0 0.0
    %2014 = vmatpush2.msra.mxu0 0.0
    %2015 = vmatprep.subr.mxu0 0.0
    %2016 = vmatpush2.msra.mxu0 0.0
    %2017 = vmatprep.subr.mxu0 0.0
    %2018 = vmatpush2.msra.mxu0 0.0
    %2019 = vmatprep.subr.mxu0 0.0
    %2020 = vmatpush2.msra.mxu0 0.0
    %2021 = vmatprep.subr.mxu0 0.0
    %2022 = vmatpush2.msra.mxu0 0.0
    %2023 = vmatprep.subr.mxu0 0.0
    %2024 = vmatpush2.msra.mxu0 0.0
    %2025 = vmatprep.subr.mxu0 0.0
    %2026 = vmatpush2.msra.mxu0 0.0
    %2027 = vmatprep.subr.mxu0 0.0
    %2028 = vmatpush2.msra.mxu0 0.0
    %2029 = vmatprep.subr.mxu0 0.0
    %2030 = vmatpush2.msra.mxu0 0.0
    %2031 = vmatprep.subr.mxu0 0.0
    %2032 = vmatpush2.msra.mxu0 0.0
    %2033 = vmatprep.mubr.f32.mxu0 0.0
    %2034 = vmatmul.mubr.f32.gmra.mxu0 %v1896
    %v2035 = vpop.f32.mrf.mxu0
    %v2036 = vadd.f32 0.0, %v2035
    %v2037 = vpop.f32.mrf.mxu0
    %v2038 = vadd.f32 0.0, %v2037
    %2039 = vdwg.mxu0
    %2040 = vmatprep.subr.mxu0 0.0
    %2041 = vmatpush1.msra.mxu0 0.0
    %2042 = vmatprep.subr.mxu0 0.0
    %2043 = vmatpush1.msra.mxu0 0.0
    %2044 = vmatprep.subr.mxu0 0.0
    %2045 = vmatpush1.msra.mxu0 0.0
    %2046 = vmatprep.subr.mxu0 0.0
    %2047 = vmatpush1.msra.mxu0 0.0
    %2048 = vmatprep.subr.mxu0 0.0
    %2049 = vmatpush1.msra.mxu0 0.0
    %2050 = vmatprep.subr.mxu0 0.0
    %2051 = vmatpush1.msra.mxu0 0.0
    %2052 = vmatprep.subr.mxu0 0.0
    %2053 = vmatpush1.msra.mxu0 0.0
    %2054 = vmatprep.subr.mxu0 0.0
    %2055 = vmatpush1.msra.mxu0 0.0
    %2056 = vmatprep.subr.mxu0 0.0
    %2057 = vmatpush1.msra.mxu0 0.0
    %2058 = vmatprep.subr.mxu0 0.0
    %2059 = vmatpush1.msra.mxu0 0.0
    %2060 = vmatprep.subr.mxu0 0.0
    %2061 = vmatpush1.msra.mxu0 0.0
    %2062 = vmatprep.subr.mxu0 0.0
    %2063 = vmatpush1.msra.mxu0 0.0
    %2064 = vmatprep.subr.mxu0 0.0
    %2065 = vmatpush1.msra.mxu0 0.0
    %2066 = vmatprep.subr.mxu0 0.0
    %2067 = vmatpush1.msra.mxu0 0.0
    %2068 = vmatprep.subr.mxu0 0.0
    %2069 = vmatpush1.msra.mxu0 0.0
    %2070 = vmatprep.subr.mxu0 %v1882
    %2071 = vmatpush1.msra.mxu0 %v1888
    %2072 = vmatprep.subr.mxu0 0.0
    %2073 = vmatpush2.msra.mxu0 0.0
    %2074 = vmatprep.subr.mxu0 0.0
    %2075 = vmatpush2.msra.mxu0 0.0
    %2076 = vmatprep.subr.mxu0 0.0
    %2077 = vmatpush2.msra.mxu0 0.0
    %2078 = vmatprep.subr.mxu0 0.0
    %2079 = vmatpush2.msra.mxu0 0.0
    %2080 = vmatprep.subr.mxu0 0.0
    %2081 = vmatpush2.msra.mxu0 0.0
    %2082 = vmatprep.subr.mxu0 0.0
    %2083 = vmatpush2.msra.mxu0 0.0
    %2084 = vmatprep.subr.mxu0 0.0
    %2085 = vmatpush2.msra.mxu0 0.0
    %2086 = vmatprep.subr.mxu0 0.0
    %2087 = vmatpush2.msra.mxu0 0.0
    %2088 = vmatprep.subr.mxu0 0.0
    %2089 = vmatpush2.msra.mxu0 0.0
    %2090 = vmatprep.subr.mxu0 0.0
    %2091 = vmatpush2.msra.mxu0 0.0
    %2092 = vmatprep.subr.mxu0 0.0
    %2093 = vmatpush2.msra.mxu0 0.0
    %2094 = vmatprep.subr.mxu0 0.0
    %2095 = vmatpush2.msra.mxu0 0.0
    %2096 = vmatprep.subr.mxu0 0.0
    %2097 = vmatpush2.msra.mxu0 0.0
    %2098 = vmatprep.subr.mxu0 0.0
    %2099 = vmatpush2.msra.mxu0 0.0
    %2100 = vmatprep.subr.mxu0 0.0
    %2101 = vmatpush2.msra.mxu0 0.0
    %2102 = vmatprep.subr.mxu0 0.0
    %2103 = vmatpush2.msra.mxu0 0.0
    %2104 = vmatprep.mubr.f32.mxu0 0.0
    %2105 = vmatmul.mubr.f32.gmra.mxu0 %v1896
    %v2106 = vpop.f32.mrf.mxu0
    %v2107 = vadd.f32 0.0, %v2106
    %v2108 = vpop.f32.mrf.mxu0
    %v2109 = vadd.f32 0.0, %v2108
    %2110 = vdwg.mxu0
    %v2111 = vadd.f32 %v1863, %v1965
    %v2112 = vadd.f32 %v1864, %v1967
    %v2113 = vadd.f32 %v1865, %v2036
    %v2114 = vadd.f32 %v1866, %v2038
    %v2115 = vadd.f32 %v1867, %v2107
    %v2116 = vadd.f32 %v1868, %v2109
    %s2117 = scalar_lea.vmem %s4, 64
    %v2118 = vld [vmem:[%s2117] sm:$0xff]
    %2119 = vrot.lane.b32.xlu0 %v885, 109
    %v2120 = vpop.permute.xlu0 %2119
    %2121 = vrot.lane.b32.xlu0 %v886, 109
    %v2122 = vpop.permute.xlu0 %2121
    %2123 = vrot.lane.b32.xlu0 %v887, 109
    %v2124 = vpop.permute.xlu0 %2123
    %2125 = vrot.lane.b32.xlu0 %v888, 109
    %v2126 = vpop.permute.xlu0 %2125
    %2127 = vrot.lane.b32.xlu0 %v889, 109
    %v2128 = vpop.permute.xlu0 %2127
    %2129 = vrot.lane.b32.xlu0 %v890, 109
    %v2130 = vpop.permute.xlu0 %2129
    %vm2131 = vcmask 891904
    %v2132 = vsel %vm2131, %v2120, %v2122
    %v2133 = vsel %vm2131, %v2122, %v2124
    %v2134 = vsel %vm2131, %v2124, %v2126
    %v2135 = vsel %vm2131, %v2126, %v2128
    %v2136 = vsel %vm2131, %v2128, %v2130
    %v2144 = vsel %vm34, %v2118, 0
    %2146 = vmatprep.subr.mxu0 0.0
    %2147 = vmatpush1.msra.mxu0 0.0
    %2148 = vmatprep.subr.mxu0 0.0
    %2149 = vmatpush1.msra.mxu0 0.0
    %2150 = vmatprep.subr.mxu0 0.0
    %2151 = vmatpush1.msra.mxu0 0.0
    %2152 = vmatprep.subr.mxu0 0.0
    %2153 = vmatpush1.msra.mxu0 0.0
    %2154 = vmatprep.subr.mxu0 0.0
    %2155 = vmatpush1.msra.mxu0 0.0
    %2156 = vmatprep.subr.mxu0 0.0
    %2157 = vmatpush1.msra.mxu0 0.0
    %2158 = vmatprep.subr.mxu0 0.0
    %2159 = vmatpush1.msra.mxu0 0.0
    %2160 = vmatprep.subr.mxu0 0.0
    %2161 = vmatpush1.msra.mxu0 0.0
    %2162 = vmatprep.subr.mxu0 0.0
    %2163 = vmatpush1.msra.mxu0 0.0
    %2164 = vmatprep.subr.mxu0 0.0
    %2165 = vmatpush1.msra.mxu0 0.0
    %2166 = vmatprep.subr.mxu0 0.0
    %2167 = vmatpush1.msra.mxu0 0.0
    %2168 = vmatprep.subr.mxu0 0.0
    %2169 = vmatpush1.msra.mxu0 0.0
    %2170 = vmatprep.subr.mxu0 0.0
    %2171 = vmatpush1.msra.mxu0 0.0
    %2172 = vmatprep.subr.mxu0 0.0
    %2173 = vmatpush1.msra.mxu0 0.0
    %2174 = vmatprep.subr.mxu0 0.0
    %2175 = vmatpush1.msra.mxu0 0.0
    %2176 = vmatprep.subr.mxu0 %v2133
    %2177 = vmatpush1.msra.mxu0 %v2132
    %2178 = vmatprep.subr.mxu0 0.0
    %2179 = vmatpush2.msra.mxu0 0.0
    %2180 = vmatprep.subr.mxu0 0.0
    %2181 = vmatpush2.msra.mxu0 0.0
    %2182 = vmatprep.subr.mxu0 0.0
    %2183 = vmatpush2.msra.mxu0 0.0
    %2184 = vmatprep.subr.mxu0 0.0
    %2185 = vmatpush2.msra.mxu0 0.0
    %2186 = vmatprep.subr.mxu0 0.0
    %2187 = vmatpush2.msra.mxu0 0.0
    %2188 = vmatprep.subr.mxu0 0.0
    %2189 = vmatpush2.msra.mxu0 0.0
    %2190 = vmatprep.subr.mxu0 0.0
    %2191 = vmatpush2.msra.mxu0 0.0
    %2192 = vmatprep.subr.mxu0 0.0
    %2193 = vmatpush2.msra.mxu0 0.0
    %2194 = vmatprep.subr.mxu0 0.0
    %2195 = vmatpush2.msra.mxu0 0.0
    %2196 = vmatprep.subr.mxu0 0.0
    %2197 = vmatpush2.msra.mxu0 0.0
    %2198 = vmatprep.subr.mxu0 0.0
    %2199 = vmatpush2.msra.mxu0 0.0
    %2200 = vmatprep.subr.mxu0 0.0
    %2201 = vmatpush2.msra.mxu0 0.0
    %2202 = vmatprep.subr.mxu0 0.0
    %2203 = vmatpush2.msra.mxu0 0.0
    %2204 = vmatprep.subr.mxu0 0.0
    %2205 = vmatpush2.msra.mxu0 0.0
    %2206 = vmatprep.subr.mxu0 0.0
    %2207 = vmatpush2.msra.mxu0 0.0
    %2208 = vmatprep.subr.mxu0 0.0
    %2209 = vmatpush2.msra.mxu0 0.0
    %2210 = vmatprep.mubr.f32.mxu0 0.0
    %2211 = vmatmul.mubr.f32.gmra.mxu0 %v2144
    %v2212 = vpop.f32.mrf.mxu0
    %v2213 = vadd.f32 0.0, %v2212
    %v2214 = vpop.f32.mrf.mxu0
    %v2215 = vadd.f32 0.0, %v2214
    %2216 = vdwg.mxu0
    %2217 = vmatprep.subr.mxu0 0.0
    %2218 = vmatpush1.msra.mxu0 0.0
    %2219 = vmatprep.subr.mxu0 0.0
    %2220 = vmatpush1.msra.mxu0 0.0
    %2221 = vmatprep.subr.mxu0 0.0
    %2222 = vmatpush1.msra.mxu0 0.0
    %2223 = vmatprep.subr.mxu0 0.0
    %2224 = vmatpush1.msra.mxu0 0.0
    %2225 = vmatprep.subr.mxu0 0.0
    %2226 = vmatpush1.msra.mxu0 0.0
    %2227 = vmatprep.subr.mxu0 0.0
    %2228 = vmatpush1.msra.mxu0 0.0
    %2229 = vmatprep.subr.mxu0 0.0
    %2230 = vmatpush1.msra.mxu0 0.0
    %2231 = vmatprep.subr.mxu0 0.0
    %2232 = vmatpush1.msra.mxu0 0.0
    %2233 = vmatprep.subr.mxu0 0.0
    %2234 = vmatpush1.msra.mxu0 0.0
    %2235 = vmatprep.subr.mxu0 0.0
    %2236 = vmatpush1.msra.mxu0 0.0
    %2237 = vmatprep.subr.mxu0 0.0
    %2238 = vmatpush1.msra.mxu0 0.0
    %2239 = vmatprep.subr.mxu0 0.0
    %2240 = vmatpush1.msra.mxu0 0.0
    %2241 = vmatprep.subr.mxu0 0.0
    %2242 = vmatpush1.msra.mxu0 0.0
    %2243 = vmatprep.subr.mxu0 0.0
    %2244 = vmatpush1.msra.mxu0 0.0
    %2245 = vmatprep.subr.mxu0 0.0
    %2246 = vmatpush1.msra.mxu0 0.0
    %2247 = vmatprep.subr.mxu0 %v2135
    %2248 = vmatpush1.msra.mxu0 %v2134
    %2249 = vmatprep.subr.mxu0 0.0
    %2250 = vmatpush2.msra.mxu0 0.0
    %2251 = vmatprep.subr.mxu0 0.0
    %2252 = vmatpush2.msra.mxu0 0.0
    %2253 = vmatprep.subr.mxu0 0.0
    %2254 = vmatpush2.msra.mxu0 0.0
    %2255 = vmatprep.subr.mxu0 0.0
    %2256 = vmatpush2.msra.mxu0 0.0
    %2257 = vmatprep.subr.mxu0 0.0
    %2258 = vmatpush2.msra.mxu0 0.0
    %2259 = vmatprep.subr.mxu0 0.0
    %2260 = vmatpush2.msra.mxu0 0.0
    %2261 = vmatprep.subr.mxu0 0.0
    %2262 = vmatpush2.msra.mxu0 0.0
    %2263 = vmatprep.subr.mxu0 0.0
    %2264 = vmatpush2.msra.mxu0 0.0
    %2265 = vmatprep.subr.mxu0 0.0
    %2266 = vmatpush2.msra.mxu0 0.0
    %2267 = vmatprep.subr.mxu0 0.0
    %2268 = vmatpush2.msra.mxu0 0.0
    %2269 = vmatprep.subr.mxu0 0.0
    %2270 = vmatpush2.msra.mxu0 0.0
    %2271 = vmatprep.subr.mxu0 0.0
    %2272 = vmatpush2.msra.mxu0 0.0
    %2273 = vmatprep.subr.mxu0 0.0
    %2274 = vmatpush2.msra.mxu0 0.0
    %2275 = vmatprep.subr.mxu0 0.0
    %2276 = vmatpush2.msra.mxu0 0.0
    %2277 = vmatprep.subr.mxu0 0.0
    %2278 = vmatpush2.msra.mxu0 0.0
    %2279 = vmatprep.subr.mxu0 0.0
    %2280 = vmatpush2.msra.mxu0 0.0
    %2281 = vmatprep.mubr.f32.mxu0 0.0
    %2282 = vmatmul.mubr.f32.gmra.mxu0 %v2144
    %v2283 = vpop.f32.mrf.mxu0
    %v2284 = vadd.f32 0.0, %v2283
    %v2285 = vpop.f32.mrf.mxu0
    %v2286 = vadd.f32 0.0, %v2285
    %2287 = vdwg.mxu0
    %2288 = vmatprep.subr.mxu0 0.0
    %2289 = vmatpush1.msra.mxu0 0.0
    %2290 = vmatprep.subr.mxu0 0.0
    %2291 = vmatpush1.msra.mxu0 0.0
    %2292 = vmatprep.subr.mxu0 0.0
    %2293 = vmatpush1.msra.mxu0 0.0
    %2294 = vmatprep.subr.mxu0 0.0
    %2295 = vmatpush1.msra.mxu0 0.0
    %2296 = vmatprep.subr.mxu0 0.0
    %2297 = vmatpush1.msra.mxu0 0.0
    %2298 = vmatprep.subr.mxu0 0.0
    %2299 = vmatpush1.msra.mxu0 0.0
    %2300 = vmatprep.subr.mxu0 0.0
    %2301 = vmatpush1.msra.mxu0 0.0
    %2302 = vmatprep.subr.mxu0 0.0
    %2303 = vmatpush1.msra.mxu0 0.0
    %2304 = vmatprep.subr.mxu0 0.0
    %2305 = vmatpush1.msra.mxu0 0.0
    %2306 = vmatprep.subr.mxu0 0.0
    %2307 = vmatpush1.msra.mxu0 0.0
    %2308 = vmatprep.subr.mxu0 0.0
    %2309 = vmatpush1.msra.mxu0 0.0
    %2310 = vmatprep.subr.mxu0 0.0
    %2311 = vmatpush1.msra.mxu0 0.0
    %2312 = vmatprep.subr.mxu0 0.0
    %2313 = vmatpush1.msra.mxu0 0.0
    %2314 = vmatprep.subr.mxu0 0.0
    %2315 = vmatpush1.msra.mxu0 0.0
    %2316 = vmatprep.subr.mxu0 0.0
    %2317 = vmatpush1.msra.mxu0 0.0
    %2318 = vmatprep.subr.mxu0 %v2130
    %2319 = vmatpush1.msra.mxu0 %v2136
    %2320 = vmatprep.subr.mxu0 0.0
    %2321 = vmatpush2.msra.mxu0 0.0
    %2322 = vmatprep.subr.mxu0 0.0
    %2323 = vmatpush2.msra.mxu0 0.0
    %2324 = vmatprep.subr.mxu0 0.0
    %2325 = vmatpush2.msra.mxu0 0.0
    %2326 = vmatprep.subr.mxu0 0.0
    %2327 = vmatpush2.msra.mxu0 0.0
    %2328 = vmatprep.subr.mxu0 0.0
    %2329 = vmatpush2.msra.mxu0 0.0
    %2330 = vmatprep.subr.mxu0 0.0
    %2331 = vmatpush2.msra.mxu0 0.0
    %2332 = vmatprep.subr.mxu0 0.0
    %2333 = vmatpush2.msra.mxu0 0.0
    %2334 = vmatprep.subr.mxu0 0.0
    %2335 = vmatpush2.msra.mxu0 0.0
    %2336 = vmatprep.subr.mxu0 0.0
    %2337 = vmatpush2.msra.mxu0 0.0
    %2338 = vmatprep.subr.mxu0 0.0
    %2339 = vmatpush2.msra.mxu0 0.0
    %2340 = vmatprep.subr.mxu0 0.0
    %2341 = vmatpush2.msra.mxu0 0.0
    %2342 = vmatprep.subr.mxu0 0.0
    %2343 = vmatpush2.msra.mxu0 0.0
    %2344 = vmatprep.subr.mxu0 0.0
    %2345 = vmatpush2.msra.mxu0 0.0
    %2346 = vmatprep.subr.mxu0 0.0
    %2347 = vmatpush2.msra.mxu0 0.0
    %2348 = vmatprep.subr.mxu0 0.0
    %2349 = vmatpush2.msra.mxu0 0.0
    %2350 = vmatprep.subr.mxu0 0.0
    %2351 = vmatpush2.msra.mxu0 0.0
    %2352 = vmatprep.mubr.f32.mxu0 0.0
    %2353 = vmatmul.mubr.f32.gmra.mxu0 %v2144
    %v2354 = vpop.f32.mrf.mxu0
    %v2355 = vadd.f32 0.0, %v2354
    %v2356 = vpop.f32.mrf.mxu0
    %v2357 = vadd.f32 0.0, %v2356
    %2358 = vdwg.mxu0
    %v2359 = vadd.f32 %v2111, %v2213
    %v2360 = vadd.f32 %v2112, %v2215
    %v2361 = vadd.f32 %v2113, %v2284
    %v2362 = vadd.f32 %v2114, %v2286
    %v2363 = vadd.f32 %v2115, %v2355
    %v2364 = vadd.f32 %v2116, %v2357
    %v2365 = vld [vmem:[%s5] sm:$0xff]
    %2367 = vset.pattern.permute.xlu0 0
    %2368 = vperm.xlu0 %2367, %v2365
    %v2369 = vpop.permute.xlu0 %2368
    %v2371 = vadd.f32 %v2359, %v2369
    %v2372 = vadd.f32 %v2360, %v2369
    %v2373 = vadd.f32 %v2361, %v2369
    %v2374 = vadd.f32 %v2362, %v2369
    %v2375 = vadd.f32 %v2363, %v2369
    %v2376 = vadd.f32 %v2364, %v2369
    %2377 = vst [vmem:[#allocation3] sm:$0xff] %v2371
    %2378 = vst [vmem:[#allocation3 + $0x8] sm:$0xff] %v2372
    %2379 = vst [vmem:[#allocation3 + $0x10] sm:$0xff] %v2373
    %2380 = vst [vmem:[#allocation3 + $0x18] sm:$0xff] %v2374
    %2381 = vst [vmem:[#allocation3 + $0x20] sm:$0xff] %v2375
    %2382 = vst.msk [vmem:[#allocation3 + $0x28] sm:$0xff] %vm34, %v2376
    // Predicated region
    $region26: #{tpu_custom_call.1} parent=1 // pred_check
      _
    $region27: #{tpu_custom_call.1} parent=1 // pred_check_branch
      %2384 = sbr.rel (0) target = $region29
    $region28: #{tpu_custom_call.1} parent=1 // pred_region
      %s2386 = ssub.s32 768, 768
      %2387 = vsyncadd [#allocation4], %s2386
      %s2389 = sshll.u32 [#allocation3], 4
      %s2390 = int_to_ptr.vmem [resolvable:$true] %s2389
      %2392 = dma.vmem_to_hbm [thread:$0]  %s2390, 768, %s6, [#allocation4]
    $region29: #{tpu_custom_call.1} parent=1 // pred_fallthru
      _
    // Predicated region
    $region30: #{tpu_custom_call.1} parent=1 // pred_check
      _
    $region31: #{tpu_custom_call.1} parent=1 // pred_check_branch
      %2394 = sbr.rel (0) target = $region33
    $region32: #{tpu_custom_call.1} parent=1 // pred_region
      %2395 = dma.done [#allocation4], 768
    $region33: #{tpu_custom_call.1} parent=1 // pred_fallthru
      _
    %2396 = vsyncpa [#allocation4], 1

</llo_original>
